<compile_context>
chip_gen: v7x
topology: tpu7x:2x2x1
jax: 0.10.0
libtpu: 0.0.40
codegen_flags: <defaults>
</compile_context>

<pallas_src>
import functools

import jax
import jax.numpy as jnp
from jax import lax
from jax.experimental import pallas as pl
from jax.experimental.pallas import tpu as pltpu


def _fused_mha_kernel(x_ref, wqkv_ref, o_ref, *, num_heads, d_out, block_b, seq):
    # x_ref    : (block_b*T, d_in)      -- block_b batch elements, rows flattened
    # wqkv_ref : (d_in, 3*H*d_out)      -- fused [Q_heads | K_heads | V_heads], bf16,
    #                                      1/sqrt(d_out) already folded into Q columns
    # o_ref    : (block_b, T, H*d_out)  -- final concatenated head layout
    H, Bb, T = num_heads, block_b, seq
    hd = H * d_out

    # --- Fused QKV projection: bf16 operands, f32 accumulation on the MXU. ---
    x = x_ref[...].astype(jnp.bfloat16)                              # (Bb*T, d_in)
    qkv = jnp.dot(x, wqkv_ref[...],
                  preferred_element_type=jnp.float32)                # (Bb*T, 3*H*d_out) f32

    # Split rows back into per-batch-element sequences (T=8 is sublane-tile aligned).
    qkv = qkv.reshape(Bb, T, 3 * hd)
    q_all = qkv[:, :, 0:hd]          # query scale already folded into the weights
    k_all = qkv[:, :, hd:2 * hd]
    v_all = qkv[:, :, 2 * hd:3 * hd]

    row = lax.broadcasted_iota(jnp.int32, (T, T), 0)
    col = lax.broadcasted_iota(jnp.int32, (T, T), 1)
    causal = (col > row)[None]       # (1, T, T); diagonal stays unmasked -> no NaN from exp

    head_outs = []
    for h in range(H):               # static unroll over the small head count
        sl = slice(h * d_out, (h + 1) * d_out)
        qh = q_all[:, :, sl].astype(jnp.bfloat16)                    # (Bb, T, d_out)
        kh = k_all[:, :, sl].astype(jnp.bfloat16)
        vh = v_all[:, :, sl].astype(jnp.bfloat16)

        # Batched over the block_b batch elements; contracts last dims (no explicit k.T).
        s = jnp.einsum("bqd,bkd->bqk", qh, kh,
                       preferred_element_type=jnp.float32)           # (Bb, T, T) f32
        s = jnp.where(causal, -jnp.inf, s)

        # Numerically stable softmax; normalization deferred until after attn @ V.
        m = jnp.max(s, axis=-1, keepdims=True)
        p = jnp.exp(s - m)                                           # unnormalized probs, f32
        denom = jnp.sum(p, axis=-1, keepdims=True)                   # (Bb, T, 1)

        o_h = jnp.einsum("bqk,bkd->bqd", p.astype(jnp.bfloat16), vh,
                         preferred_element_type=jnp.float32)         # (Bb, T, d_out)
        # Normalize after PV (T*d_out muls, not T*T); EUP approximate reciprocal is ~free.
        head_outs.append(o_h * pl.reciprocal(denom, approx=True))

    out = jnp.concatenate(head_outs, axis=-1)                        # (Bb, T, H*d_out)
    o_ref[...] = out.astype(o_ref.dtype)


def multi_head_attention_wrapper(x, wq, wk, wv, *, block_b=None):
    """x: (B, T, d_in); wq/wk/wv: (H, d_in, d_out). Returns (B, T, H * d_out)."""
    B, T, d_in = x.shape
    H, _, d_out = wq.shape
    hd = H * d_out

    # Fuse the per-head projections into one (d_in, 3*H*d_out) operand so that column
    # block h*d_out:(h+1)*d_out of the Q / K / V sections equals w*[h]; fold the
    # 1/sqrt(d_out) query scale into the Q columns; cast to bf16 for the MXU.
    scale = 1.0 / jnp.sqrt(jnp.asarray(d_out, jnp.float32))
    q_blk = (jnp.transpose(wq, (1, 0, 2)) * scale).reshape(d_in, hd)
    k_blk = jnp.transpose(wk, (1, 0, 2)).reshape(d_in, hd)
    v_blk = jnp.transpose(wv, (1, 0, 2)).reshape(d_in, hd)
    w_qkv = jnp.concatenate([q_blk, k_blk, v_blk], axis=-1).astype(jnp.bfloat16)

    # Batch tile: fill the MXU M dimension (target <= 256 rows) while keeping >= 2 grid
    # steps when B allows, so both v7x TensorCores get work (harmless on v5e/v6e).
    if block_b is None:
        block_b = max(1, min(B, max(1, 256 // T)))
        if B >= 2:
            block_b = min(block_b, B // 2)
    while B % block_b:
        block_b -= 1
    grid_b = B // block_b

    kernel = functools.partial(_fused_mha_kernel, num_heads=H, d_out=d_out,
                               block_b=block_b, seq=T)

    out = pl.pallas_call(
        kernel,
        out_shape=jax.ShapeDtypeStruct((B, T, hd), x.dtype),
        grid_spec=pltpu.PrefetchScalarGridSpec(
            num_scalar_prefetch=0,
            grid=(grid_b,),
            in_specs=[
                # block_b*T rows of the flattened (B*T, d_in) activations per step.
                pl.BlockSpec((block_b * T, d_in), lambda b: (b, 0)),
                # Constant block index -> fused bf16 weight stays VMEM-resident across the grid.
                # TODO(synk): at real model sizes add K/N blocking over d_in / 3*H*d_out (grid
                # axis marked "arbitrary" + f32 accumulator) so the double-buffered resident
                # weight fits v7x's 64 MiB VMEM.
                pl.BlockSpec((d_in, 3 * hd), lambda b: (0, 0)),
            ],
            out_specs=pl.BlockSpec((block_b, T, hd), lambda b: (b, 0, 0)),
        ),
        compiler_params=pltpu.CompilerParams(
            dimension_semantics=("parallel",)),
    )(x.reshape(B * T, d_in), w_qkv)

    return out  # already in torch.cat([head(x) for head in heads], dim=-1) layout


def _reference(x, wq, wk, wv):
    """Pure-JAX f32 reference mirroring the PyTorch CausalAttention heads + concat."""
    B, T, d_in = x.shape
    H, _, d_out = wq.shape
    outs = []
    for h in range(H):
        q = x @ wq[h]
        k = x @ wk[h]
        v = x @ wv[h]
        scores = jnp.einsum("btd,bsd->bts", q, k) / jnp.sqrt(jnp.float32(d_out))
        mask = jnp.triu(jnp.ones((T, T), dtype=bool), k=1)
        scores = jnp.where(mask[None], -jnp.inf, scores)
        attn = jax.nn.softmax(scores, axis=-1)
        outs.append(jnp.einsum("bts,bsd->btd", attn, v))
    return jnp.concatenate(outs, axis=-1)


if __name__ == "__main__":
    # Module hyperparameters (small, consistent with the forward's (B, T, d_in) input).
    d_in, d_out = 32, 16
    context_length = 8
    num_heads = 4
    dropout = 0.0          # dropout omitted in kernel (eval semantics)
    B, T = 8, context_length   # B=8 -> block_b=4, grid=(2,), M=32 rows per projection

    key = jax.random.PRNGKey(0)
    kx, kq, kk, kv = jax.random.split(key, 4)
    x = jax.random.normal(kx, (B, T, d_in), dtype=jnp.float32)
    # Deterministic synthetic weights; stored as (H, d_in, d_out) so y = x @ W
    # (equivalent to torch Linear weight of shape (d_out, d_in), transposed).
    wq = 0.05 * jax.random.normal(kq, (num_heads, d_in, d_out), dtype=jnp.float32)
    wk = 0.05 * jax.random.normal(kk, (num_heads, d_in, d_out), dtype=jnp.float32)
    wv = 0.05 * jax.random.normal(kv, (num_heads, d_in, d_out), dtype=jnp.float32)

    out = multi_head_attention_wrapper(x, wq, wk, wv)
    out = jax.block_until_ready(out)

    ref = _reference(x, wq, wk, wv)
    assert out.shape == (B, T, num_heads * d_out), out.shape
    # Tolerance reflects bf16 MXU operands (f32 accumulation) + EUP approximate reciprocal.
    assert jnp.allclose(out, ref, atol=1e-2, rtol=1e-2), float(jnp.max(jnp.abs(out - ref)))

    print("KERNEL_OK")
</pallas_src>

<mosaic_0001>
module attributes {stable_mosaic.version = 11 : i64} {
  func.func @_fused_mha_kernel(%arg0: i32, %arg1: memref<32x32xf32, #tpu.memory_space<vmem>>, %arg2: memref<32x192xbf16, #tpu.memory_space<vmem>>, %arg3: memref<4x8x64xf32, #tpu.memory_space<vmem>>) attributes {dimension_semantics = [#tpu.dimension_semantics<parallel>], iteration_bounds = array<i64: 2>, scalar_prefetch = 0 : i64, scratch_operands = 0 : i64, tpu.core_type = #tpu.core_type<tc>, window_params = [{transform_indices = @transform_0, window_bounds = array<i64: 32, 32>}, {pipeline_mode = #tpu.pipeline_mode<synchronous>, transform_indices = @transform_1, window_bounds = array<i64: 32, 192>}, {transform_indices = @transform_2, window_bounds = array<i64: 4, 8, 64>}]} {
    %c0 = arith.constant 0 : index
    %c0_0 = arith.constant 0 : index
    %0 = vector.load %arg1[%c0, %c0_0] : memref<32x32xf32, #tpu.memory_space<vmem>>, vector<32x32xf32>
    %1 = arith.truncf %0 : vector<32x32xf32> to vector<32x32xbf16>
    %c0_1 = arith.constant 0 : index
    %c0_2 = arith.constant 0 : index
    %2 = vector.load %arg2[%c0_1, %c0_2] : memref<32x192xbf16, #tpu.memory_space<vmem>>, vector<32x192xbf16>
    %cst = arith.constant dense<0.000000e+00> : vector<32x192xf32>
    %3 = tpu.matmul %1, %2, %cst {dimension_numbers = #tpu.dot_dimension_numbers<[1], [0], [0], [1], [0, 0, 1, 1], [], []>} : vector<32x32xbf16>, vector<32x192xbf16>, vector<32x192xf32> -> vector<32x192xf32>
    %4 = vector.shape_cast %3 : vector<32x192xf32> to vector<4x8x192xf32>
    %5 = vector.extract_strided_slice %4 {offsets = [0, 0, 0], sizes = [4, 8, 64], strides = [1, 1, 1]} : vector<4x8x192xf32> to vector<4x8x64xf32>
    %6 = vector.extract_strided_slice %4 {offsets = [0, 0, 64], sizes = [4, 8, 64], strides = [1, 1, 1]} : vector<4x8x192xf32> to vector<4x8x64xf32>
    %7 = vector.extract_strided_slice %4 {offsets = [0, 0, 128], sizes = [4, 8, 64], strides = [1, 1, 1]} : vector<4x8x192xf32> to vector<4x8x64xf32>
    %8 = tpu.iota {dimensions = array<i32: 0>} : vector<8x8xi32>
    %9 = tpu.iota {dimensions = array<i32: 1>} : vector<8x8xi32>
    %10 = arith.cmpi sgt, %9, %8 : vector<8x8xi32>
    %11 = vector.shape_cast %10 : vector<8x8xi1> to vector<1x8x8xi1>
    %12 = vector.extract_strided_slice %5 {offsets = [0, 0, 0], sizes = [4, 8, 16], strides = [1, 1, 1]} : vector<4x8x64xf32> to vector<4x8x16xf32>
    %13 = arith.truncf %12 : vector<4x8x16xf32> to vector<4x8x16xbf16>
    %14 = vector.extract_strided_slice %6 {offsets = [0, 0, 0], sizes = [4, 8, 16], strides = [1, 1, 1]} : vector<4x8x64xf32> to vector<4x8x16xf32>
    %15 = arith.truncf %14 : vector<4x8x16xf32> to vector<4x8x16xbf16>
    %16 = vector.extract_strided_slice %7 {offsets = [0, 0, 0], sizes = [4, 8, 16], strides = [1, 1, 1]} : vector<4x8x64xf32> to vector<4x8x16xf32>
    %17 = arith.truncf %16 : vector<4x8x16xf32> to vector<4x8x16xbf16>
    "tpu.trace_start"() <{level = 10 : i32, message = "bqd,bkd->bqk"}> : () -> ()
    %cst_3 = arith.constant dense<0.000000e+00> : vector<4x8x8xf32>
    %18 = tpu.matmul %13, %15, %cst_3 {dimension_numbers = #tpu.dot_dimension_numbers<[2], [2], [1], [1], [0, 0, 0, 1, 1, 1], [0], [0]>} : vector<4x8x16xbf16>, vector<4x8x16xbf16>, vector<4x8x8xf32> -> vector<4x8x8xf32>
    %cst_4 = arith.constant 0xFF800000 : f32
    "tpu.trace_stop"() : () -> ()
    %19 = vector.shape_cast %11 : vector<1x8x8xi1> to vector<1x8x8xi1>
    %20 = vector.broadcast %19 : vector<1x8x8xi1> to vector<4x8x8xi1>
    %21 = vector.broadcast %cst_4 : f32 to vector<4x8x8xf32>
    %22 = arith.select %20, %21, %18 : vector<4x8x8xi1>, vector<4x8x8xf32>
    %cst_5 = arith.constant dense<0xFF800000> : vector<4x8xf32>
    %23 = vector.multi_reduction <maximumf>, %22, %cst_5 [2] : vector<4x8x8xf32> to vector<4x8xf32>
    %24 = vector.shape_cast %23 : vector<4x8xf32> to vector<4x8x1xf32>
    %25 = vector.broadcast %24 : vector<4x8x1xf32> to vector<4x8x8xf32>
    %26 = arith.subf %22, %25 : vector<4x8x8xf32>
    %27 = math.exp %26 : vector<4x8x8xf32>
    %cst_6 = arith.constant dense<0.000000e+00> : vector<4x8xf32>
    %28 = vector.multi_reduction <add>, %27, %cst_6 [2] : vector<4x8x8xf32> to vector<4x8xf32>
    %29 = vector.shape_cast %28 : vector<4x8xf32> to vector<4x8x1xf32>
    %30 = arith.truncf %27 : vector<4x8x8xf32> to vector<4x8x8xbf16>
    "tpu.trace_start"() <{level = 10 : i32, message = "bqk,bkd->bqd"}> : () -> ()
    %cst_7 = arith.constant dense<0.000000e+00> : vector<4x8x16xf32>
    %31 = tpu.matmul %30, %17, %cst_7 {dimension_numbers = #tpu.dot_dimension_numbers<[2], [1], [1], [2], [0, 0, 0, 1, 1, 2], [0], [0]>} : vector<4x8x8xbf16>, vector<4x8x16xbf16>, vector<4x8x16xf32> -> vector<4x8x16xf32>
    "tpu.trace_stop"() : () -> ()
    %32 = tpu.reciprocal %29 {approx = true} : vector<4x8x1xf32> -> vector<4x8x1xf32>
    %33 = vector.broadcast %32 : vector<4x8x1xf32> to vector<4x8x16xf32>
    %34 = arith.mulf %31, %33 : vector<4x8x16xf32>
    %35 = vector.extract_strided_slice %5 {offsets = [0, 0, 16], sizes = [4, 8, 16], strides = [1, 1, 1]} : vector<4x8x64xf32> to vector<4x8x16xf32>
    %36 = arith.truncf %35 : vector<4x8x16xf32> to vector<4x8x16xbf16>
    %37 = vector.extract_strided_slice %6 {offsets = [0, 0, 16], sizes = [4, 8, 16], strides = [1, 1, 1]} : vector<4x8x64xf32> to vector<4x8x16xf32>
    %38 = arith.truncf %37 : vector<4x8x16xf32> to vector<4x8x16xbf16>
    %39 = vector.extract_strided_slice %7 {offsets = [0, 0, 16], sizes = [4, 8, 16], strides = [1, 1, 1]} : vector<4x8x64xf32> to vector<4x8x16xf32>
    %40 = arith.truncf %39 : vector<4x8x16xf32> to vector<4x8x16xbf16>
    "tpu.trace_start"() <{level = 10 : i32, message = "bqd,bkd->bqk"}> : () -> ()
    %cst_8 = arith.constant dense<0.000000e+00> : vector<4x8x8xf32>
    %41 = tpu.matmul %36, %38, %cst_8 {dimension_numbers = #tpu.dot_dimension_numbers<[2], [2], [1], [1], [0, 0, 0, 1, 1, 1], [0], [0]>} : vector<4x8x16xbf16>, vector<4x8x16xbf16>, vector<4x8x8xf32> -> vector<4x8x8xf32>
    %cst_9 = arith.constant 0xFF800000 : f32
    "tpu.trace_stop"() : () -> ()
    %42 = vector.shape_cast %11 : vector<1x8x8xi1> to vector<1x8x8xi1>
    %43 = vector.broadcast %42 : vector<1x8x8xi1> to vector<4x8x8xi1>
    %44 = vector.broadcast %cst_9 : f32 to vector<4x8x8xf32>
    %45 = arith.select %43, %44, %41 : vector<4x8x8xi1>, vector<4x8x8xf32>
    %cst_10 = arith.constant dense<0xFF800000> : vector<4x8xf32>
    %46 = vector.multi_reduction <maximumf>, %45, %cst_10 [2] : vector<4x8x8xf32> to vector<4x8xf32>
    %47 = vector.shape_cast %46 : vector<4x8xf32> to vector<4x8x1xf32>
    %48 = vector.broadcast %47 : vector<4x8x1xf32> to vector<4x8x8xf32>
    %49 = arith.subf %45, %48 : vector<4x8x8xf32>
    %50 = math.exp %49 : vector<4x8x8xf32>
    %cst_11 = arith.constant dense<0.000000e+00> : vector<4x8xf32>
    %51 = vector.multi_reduction <add>, %50, %cst_11 [2] : vector<4x8x8xf32> to vector<4x8xf32>
    %52 = vector.shape_cast %51 : vector<4x8xf32> to vector<4x8x1xf32>
    %53 = arith.truncf %50 : vector<4x8x8xf32> to vector<4x8x8xbf16>
    "tpu.trace_start"() <{level = 10 : i32, message = "bqk,bkd->bqd"}> : () -> ()
    %cst_12 = arith.constant dense<0.000000e+00> : vector<4x8x16xf32>
    %54 = tpu.matmul %53, %40, %cst_12 {dimension_numbers = #tpu.dot_dimension_numbers<[2], [1], [1], [2], [0, 0, 0, 1, 1, 2], [0], [0]>} : vector<4x8x8xbf16>, vector<4x8x16xbf16>, vector<4x8x16xf32> -> vector<4x8x16xf32>
    "tpu.trace_stop"() : () -> ()
    %55 = tpu.reciprocal %52 {approx = true} : vector<4x8x1xf32> -> vector<4x8x1xf32>
    %56 = vector.broadcast %55 : vector<4x8x1xf32> to vector<4x8x16xf32>
    %57 = arith.mulf %54, %56 : vector<4x8x16xf32>
    %58 = vector.extract_strided_slice %5 {offsets = [0, 0, 32], sizes = [4, 8, 16], strides = [1, 1, 1]} : vector<4x8x64xf32> to vector<4x8x16xf32>
    %59 = arith.truncf %58 : vector<4x8x16xf32> to vector<4x8x16xbf16>
    %60 = vector.extract_strided_slice %6 {offsets = [0, 0, 32], sizes = [4, 8, 16], strides = [1, 1, 1]} : vector<4x8x64xf32> to vector<4x8x16xf32>
    %61 = arith.truncf %60 : vector<4x8x16xf32> to vector<4x8x16xbf16>
    %62 = vector.extract_strided_slice %7 {offsets = [0, 0, 32], sizes = [4, 8, 16], strides = [1, 1, 1]} : vector<4x8x64xf32> to vector<4x8x16xf32>
    %63 = arith.truncf %62 : vector<4x8x16xf32> to vector<4x8x16xbf16>
    "tpu.trace_start"() <{level = 10 : i32, message = "bqd,bkd->bqk"}> : () -> ()
    %cst_13 = arith.constant dense<0.000000e+00> : vector<4x8x8xf32>
    %64 = tpu.matmul %59, %61, %cst_13 {dimension_numbers = #tpu.dot_dimension_numbers<[2], [2], [1], [1], [0, 0, 0, 1, 1, 1], [0], [0]>} : vector<4x8x16xbf16>, vector<4x8x16xbf16>, vector<4x8x8xf32> -> vector<4x8x8xf32>
    %cst_14 = arith.constant 0xFF800000 : f32
    "tpu.trace_stop"() : () -> ()
    %65 = vector.shape_cast %11 : vector<1x8x8xi1> to vector<1x8x8xi1>
    %66 = vector.broadcast %65 : vector<1x8x8xi1> to vector<4x8x8xi1>
    %67 = vector.broadcast %cst_14 : f32 to vector<4x8x8xf32>
    %68 = arith.select %66, %67, %64 : vector<4x8x8xi1>, vector<4x8x8xf32>
    %cst_15 = arith.constant dense<0xFF800000> : vector<4x8xf32>
    %69 = vector.multi_reduction <maximumf>, %68, %cst_15 [2] : vector<4x8x8xf32> to vector<4x8xf32>
    %70 = vector.shape_cast %69 : vector<4x8xf32> to vector<4x8x1xf32>
    %71 = vector.broadcast %70 : vector<4x8x1xf32> to vector<4x8x8xf32>
    %72 = arith.subf %68, %71 : vector<4x8x8xf32>
    %73 = math.exp %72 : vector<4x8x8xf32>
    %cst_16 = arith.constant dense<0.000000e+00> : vector<4x8xf32>
    %74 = vector.multi_reduction <add>, %73, %cst_16 [2] : vector<4x8x8xf32> to vector<4x8xf32>
    %75 = vector.shape_cast %74 : vector<4x8xf32> to vector<4x8x1xf32>
    %76 = arith.truncf %73 : vector<4x8x8xf32> to vector<4x8x8xbf16>
    "tpu.trace_start"() <{level = 10 : i32, message = "bqk,bkd->bqd"}> : () -> ()
    %cst_17 = arith.constant dense<0.000000e+00> : vector<4x8x16xf32>
    %77 = tpu.matmul %76, %63, %cst_17 {dimension_numbers = #tpu.dot_dimension_numbers<[2], [1], [1], [2], [0, 0, 0, 1, 1, 2], [0], [0]>} : vector<4x8x8xbf16>, vector<4x8x16xbf16>, vector<4x8x16xf32> -> vector<4x8x16xf32>
    "tpu.trace_stop"() : () -> ()
    %78 = tpu.reciprocal %75 {approx = true} : vector<4x8x1xf32> -> vector<4x8x1xf32>
    %79 = vector.broadcast %78 : vector<4x8x1xf32> to vector<4x8x16xf32>
    %80 = arith.mulf %77, %79 : vector<4x8x16xf32>
    %81 = vector.extract_strided_slice %5 {offsets = [0, 0, 48], sizes = [4, 8, 16], strides = [1, 1, 1]} : vector<4x8x64xf32> to vector<4x8x16xf32>
    %82 = arith.truncf %81 : vector<4x8x16xf32> to vector<4x8x16xbf16>
    %83 = vector.extract_strided_slice %6 {offsets = [0, 0, 48], sizes = [4, 8, 16], strides = [1, 1, 1]} : vector<4x8x64xf32> to vector<4x8x16xf32>
    %84 = arith.truncf %83 : vector<4x8x16xf32> to vector<4x8x16xbf16>
    %85 = vector.extract_strided_slice %7 {offsets = [0, 0, 48], sizes = [4, 8, 16], strides = [1, 1, 1]} : vector<4x8x64xf32> to vector<4x8x16xf32>
    %86 = arith.truncf %85 : vector<4x8x16xf32> to vector<4x8x16xbf16>
    "tpu.trace_start"() <{level = 10 : i32, message = "bqd,bkd->bqk"}> : () -> ()
    %cst_18 = arith.constant dense<0.000000e+00> : vector<4x8x8xf32>
    %87 = tpu.matmul %82, %84, %cst_18 {dimension_numbers = #tpu.dot_dimension_numbers<[2], [2], [1], [1], [0, 0, 0, 1, 1, 1], [0], [0]>} : vector<4x8x16xbf16>, vector<4x8x16xbf16>, vector<4x8x8xf32> -> vector<4x8x8xf32>
    %cst_19 = arith.constant 0xFF800000 : f32
    "tpu.trace_stop"() : () -> ()
    %88 = vector.shape_cast %11 : vector<1x8x8xi1> to vector<1x8x8xi1>
    %89 = vector.broadcast %88 : vector<1x8x8xi1> to vector<4x8x8xi1>
    %90 = vector.broadcast %cst_19 : f32 to vector<4x8x8xf32>
    %91 = arith.select %89, %90, %87 : vector<4x8x8xi1>, vector<4x8x8xf32>
    %cst_20 = arith.constant dense<0xFF800000> : vector<4x8xf32>
    %92 = vector.multi_reduction <maximumf>, %91, %cst_20 [2] : vector<4x8x8xf32> to vector<4x8xf32>
    %93 = vector.shape_cast %92 : vector<4x8xf32> to vector<4x8x1xf32>
    %94 = vector.broadcast %93 : vector<4x8x1xf32> to vector<4x8x8xf32>
    %95 = arith.subf %91, %94 : vector<4x8x8xf32>
    %96 = math.exp %95 : vector<4x8x8xf32>
    %cst_21 = arith.constant dense<0.000000e+00> : vector<4x8xf32>
    %97 = vector.multi_reduction <add>, %96, %cst_21 [2] : vector<4x8x8xf32> to vector<4x8xf32>
    %98 = vector.shape_cast %97 : vector<4x8xf32> to vector<4x8x1xf32>
    %99 = arith.truncf %96 : vector<4x8x8xf32> to vector<4x8x8xbf16>
    "tpu.trace_start"() <{level = 10 : i32, message = "bqk,bkd->bqd"}> : () -> ()
    %cst_22 = arith.constant dense<0.000000e+00> : vector<4x8x16xf32>
    %100 = tpu.matmul %99, %86, %cst_22 {dimension_numbers = #tpu.dot_dimension_numbers<[2], [1], [1], [2], [0, 0, 0, 1, 1, 2], [0], [0]>} : vector<4x8x8xbf16>, vector<4x8x16xbf16>, vector<4x8x16xf32> -> vector<4x8x16xf32>
    "tpu.trace_stop"() : () -> ()
    %101 = tpu.reciprocal %98 {approx = true} : vector<4x8x1xf32> -> vector<4x8x1xf32>
    %102 = vector.broadcast %101 : vector<4x8x1xf32> to vector<4x8x16xf32>
    %103 = arith.mulf %100, %102 : vector<4x8x16xf32>
    %104 = tpu.concatenate %34, %57, %80, %103 in 2 : vector<4x8x16xf32>, vector<4x8x16xf32>, vector<4x8x16xf32>, vector<4x8x16xf32> -> vector<4x8x64xf32>
    %c0_23 = arith.constant 0 : index
    %c0_24 = arith.constant 0 : index
    %c0_25 = arith.constant 0 : index
    %105 = vector.load %arg3[%c0_23, %c0_24, %c0_25] : memref<4x8x64xf32, #tpu.memory_space<vmem>>, vector<4x8x64xf32>
    tpu.vector_store %arg3[%c0_23, %c0_24, %c0_25], %104 {strides = array<i32>} : memref<4x8x64xf32, #tpu.memory_space<vmem>>, vector<4x8x64xf32>,
    return
  }
  func.func @transform_0(%arg0: i32) -> (i32, i32) {
    %c0_i32 = arith.constant 0 : i32
    %c0_i32_0 = arith.constant 0 : i32
    return %arg0, %c0_i32 : i32, i32
  }
  func.func @transform_1(%arg0: i32) -> (i32, i32) {
    %c0_i32 = arith.constant 0 : i32
    %c0_i32_0 = arith.constant 0 : i32
    %c0_i32_1 = arith.constant 0 : i32
    return %c0_i32, %c0_i32_0 : i32, i32
  }
  func.func @transform_2(%arg0: i32) -> (i32, i32, i32) {
    %c0_i32 = arith.constant 0 : i32
    %c0_i32_0 = arith.constant 0 : i32
    %c0_i32_1 = arith.constant 0 : i32
    return %arg0, %c0_i32, %c0_i32_0 : i32, i32, i32
  }
}

</mosaic_0001>

<llo_original>
// kernel: tpu_custom_call.1
$region0: #{tpu_custom_call.1}
  #allocation0 [shape = 'u32[]', space=smem, size = 0x4, offset = 0x4, fixed_abs, tag = 'smem constant byte address 0x4 - core index']
  #allocation1 [shape = 'u32[144,128]{1,0:T(1,128)}', space=vmem, size = 0x12000, scoped, tag = 'internal scratch']
  %s0 = inlined_call_operand.vmem [shape: f32[64,32], index: 0, kind: input, shape index: {}]
  %s1 = inlined_call_operand.vmem [shape: bf16[32,192], index: 1, kind: input, shape index: {}]
  %s2 = inlined_call_operand.hbm [shape: f32[8,8,64], index: 2, kind: output, shape index: {}]
  %s3 = sld [smem:[#allocation0]]
  $region41: #{tpu_custom_call.1} parent=0
    _
  %s5 = ssub.s32 1, %s3
  %s6 = scalar_select 0, %s5, %s3
  $region1: #{tpu_custom_call.1} parent=0
    #allocation2 [shape = 'u8[32768]{0}', space=vmem, size = 0x8000, scoped, tag = 'output window, operand 0']
    #allocation3 [shape = 's32[2]{0}', space=sflag, size = 0x8, scoped, tag = 'scoped memory for tpu_custom_call.1']
    %7 = vsyncpa [#allocation3], 0
    %s8 = scalar_lea.sflag [#allocation3], 1
    %9 = vsyncpa %s8, 0
    loop: start=0, step=1, limit=4
    $region2: #{tpu_custom_call.1} parent=1 // loop_pre_header
      _
    $region3: #{tpu_custom_call.1} parent=1 // loop_header
      %s11 = sphi 0, %s15
      %p12 = scmp.ge.s32.totalorder %s11, 4
      %s21 = sphi 0, %s23
      %s24 = sphi 0, %s21
      %s25 = sphi 0, %s24
      %s41 = sphi 0, %s25
      %s45 = sphi 0, %s45
      %s47 = sphi 0, %s45
      %s48 = sphi 0, %s47
      %s62 = sphi 0, %s48
      %s68 = sphi 0, %s70
      %s71 = sphi 0, %s68
      %s72 = sphi 0, %s71
      %s88 = sphi 0, %s72
    $region4: #{tpu_custom_call.1} parent=1 // loop_header_branch
      %14 = sbr.rel (%p12) target = $region8
    $region5: #{tpu_custom_call.1} parent=1 // loop_body
      %s16 = ssub.s32 %s11, 1
      %s17 = ssub.s32 %s11, 2
      %s18 = sadd.s32 %s11, 1
      %s19 = ssub.s32 %s11, %s18
      %p20 = scmp.eq.s32.totalorder %s19, 0
      %s22 = sadd.s32 %s21, 1
      %s23 = scalar_select %p20, %s21, %s22
      %p26 = pneg %p20
      %p27 = scmp.eq.s32.totalorder %s11, 1
      %p28 = por %p26, %p27
      %p29 = scmp.ne.s32.totalorder %s21, %s24
      %p30 = scmp.eq.s32.totalorder %s11, 0
      %p31 = por %p29, %p30
      %p32 = scmp.ne.s32.totalorder %s21, %s24
      %p33 = scmp.eq.s32.totalorder %s16, 1
      %p34 = por %p32, %p33
      %p35 = scmp.ne.s32.totalorder %s24, %s25
      %p36 = scmp.eq.s32.totalorder %s16, 0
      %p37 = por %p35, %p36
      %p38 = scmp.ne.s32.totalorder %s24, %s25
      %p39 = scmp.eq.s32.totalorder %s17, 1
      %p40 = por %p38, %p39
      %p42 = scmp.ne.s32.totalorder %s25, %s41
      %p43 = scmp.eq.s32.totalorder %s17, 0
      %p44 = por %p42, %p43
      %s46 = sadd.s32 %s45, 1
      %p49 = scmp.eq.s32.totalorder %s11, 1
      %p50 = scmp.ne.s32.totalorder %s45, %s47
      %p51 = scmp.eq.s32.totalorder %s11, 0
      %p52 = por %p50, %p51
      %p53 = scmp.ne.s32.totalorder %s45, %s47
      %p54 = scmp.eq.s32.totalorder %s16, 1
      %p55 = por %p53, %p54
      %p56 = scmp.ne.s32.totalorder %s47, %s48
      %p57 = scmp.eq.s32.totalorder %s16, 0
      %p58 = por %p56, %p57
      %p59 = scmp.ne.s32.totalorder %s47, %s48
      %p60 = scmp.eq.s32.totalorder %s17, 1
      %p61 = por %p59, %p60
      %p63 = scmp.ne.s32.totalorder %s48, %s62
      %p64 = scmp.eq.s32.totalorder %s17, 0
      %p65 = por %p63, %p64
      %s66 = ssub.s32 %s11, %s18
      %p67 = scmp.eq.s32.totalorder %s66, 0
      %s69 = sadd.s32 %s68, 1
      %s70 = scalar_select %p67, %s68, %s69
      %p73 = pneg %p67
      %p74 = scmp.eq.s32.totalorder %s11, 1
      %p75 = por %p73, %p74
      %p76 = scmp.ne.s32.totalorder %s68, %s71
      %p77 = scmp.eq.s32.totalorder %s11, 0
      %p78 = por %p76, %p77
      %p79 = scmp.ne.s32.totalorder %s68, %s71
      %p80 = scmp.eq.s32.totalorder %s16, 1
      %p81 = por %p79, %p80
      %p82 = scmp.ne.s32.totalorder %s71, %s72
      %p83 = scmp.eq.s32.totalorder %s16, 0
      %p84 = por %p82, %p83
      %p85 = scmp.ne.s32.totalorder %s71, %s72
      %p86 = scmp.eq.s32.totalorder %s17, 1
      %p87 = por %p85, %p86
      %p89 = scmp.ne.s32.totalorder %s72, %s88
      %p90 = scmp.eq.s32.totalorder %s17, 0
      %p91 = por %p89, %p90
      %p92 = scmp.le.s32.totalorder 1, %s11
      %p93 = scmp.lt.s32.totalorder %s11, 3
      %p94 = pnand %p92, %p93
      %p95 = pneg %p94
      // Predicated region
      $region9: #{tpu_custom_call.1} parent=5 // pred_check
        _
      $region10: #{tpu_custom_call.1} parent=5 // pred_check_branch
        %97 = sbr.rel (%p94) target = $region12
      $region11: #{tpu_custom_call.1} parent=5 // pred_region
        %s98 = ssub.s32 %s11, 1
        // Predicated region
        $region13: #{tpu_custom_call.1} parent=11 // pred_check
          %p99 = pneg %p58
        $region14: #{tpu_custom_call.1} parent=11 // pred_check_branch
          %101 = sbr.rel (%p99) target = $region16
        $region15: #{tpu_custom_call.1} parent=11 // pred_region
          _
        $region16: #{tpu_custom_call.1} parent=11 // pred_fallthru
          _
      $region12: #{tpu_custom_call.1} parent=5 // pred_fallthru
        _
      %p102 = scmp.lt.s32.totalorder %s11, 2
      // Predicated region
      $region17: #{tpu_custom_call.1} parent=5 // pred_check
        %p103 = pneg %p102
      $region18: #{tpu_custom_call.1} parent=5 // pred_check_branch
        %105 = sbr.rel (%p103) target = $region20
      $region19: #{tpu_custom_call.1} parent=5 // pred_region
        // Predicated region
        $region21: #{tpu_custom_call.1} parent=19 // pred_check
          %p106 = pneg %p31
        $region22: #{tpu_custom_call.1} parent=19 // pred_check_branch
          %108 = sbr.rel (%p106) target = $region24
        $region23: #{tpu_custom_call.1} parent=19 // pred_region
          %s109 = smul.u32 4, %s11
          %p110 = scmp.lt.s32.totalorder %s109, 7
          %s111 = scalar_select %p110, %s109, 7
          %s112 = smul.addr %s111, 8
          %s113 = scalar_lea.vmem %s0, %s112
          %s114 = smul.u32 4, %s11
        $region24: #{tpu_custom_call.1} parent=19 // pred_fallthru
          _
      $region20: #{tpu_custom_call.1} parent=5 // pred_fallthru
        _
      %p115 = scmp.le.s32.totalorder 1, %s11
      %p116 = scmp.lt.s32.totalorder %s11, 3
      %p117 = pnand %p115, %p116
      %p118 = pneg %p117
      // Predicated region
      $region25: #{tpu_custom_call.1} parent=5 // pred_check
        _
      $region26: #{tpu_custom_call.1} parent=5 // pred_check_branch
        %120 = sbr.rel (%p117) target = $region28
      $region27: #{tpu_custom_call.1} parent=5 // pred_region
        %s121 = ssub.s32 %s11, 1
        %s122 = smul.u32 4, %s16
        %p123 = scmp.lt.s32.totalorder %s122, 7
        %s124 = scalar_select %p123, %s122, 7
        %s125 = smul.addr %s124, 8
        %s126 = scalar_lea.vmem %s0, %s125
        %p127 = pneg %p37
        %p128 = pneg %p34
        %p129 = pneg %p58
        %p130 = pneg %p55
        %p131 = pneg %p84
        %p132 = pneg %p81
        %s133 = sand.u32 %s71, 1
        %s134 = scalar_lea.sflag [#allocation3], %s133
        %s135 = sand.u32 %s71, 1
        %s136 = smul.addr %s135, 32
        %s137 = scalar_lea.vmem [#allocation2], %s136
        %s138 = smul.u32 4, %s16
        %p139 = scmp.lt.s32.totalorder %s138, 7
        %s140 = scalar_select %p139, %s138, 7
        %s141 = smul.addr %s140, 8
        %s142 = scalar_lea.vmem %s0, %s141
        %s143 = smul.u32 4, %s16
        %s144 = smul.u32 4, %s16
        %v146 = vld [vmem:[%s142] sm:$0xff]
        %v147 = vld [vmem:[%s142 + $0x8] sm:$0xff]
        %v148 = vld [vmem:[%s142 + $0x10] sm:$0xff]
        %v149 = vld [vmem:[%s142 + $0x18] sm:$0xff]
        %v150 = vpack.c.bf16 %v147, %v146
        %v151 = vpack.c.bf16 %v149, %v148
        %v152 = vld [vmem:[%s1] sm:$0xff]
        %v153 = vld [vmem:[%s1 + $0x8] sm:$0xff]
        %v154 = vld [vmem:[%s1 + $0x10] sm:$0xff]
        %v155 = vld [vmem:[%s1 + $0x18] sm:$0xff]
        %v160 = vunpack.c.l.b16 %v152
        %v161 = vunpack.c.h.b16 %v152
        %v162 = vunpack.c.l.b16 %v153
        %v163 = vunpack.c.h.b16 %v153
        %v164 = vunpack.c.l.b16 %v154
        %v165 = vunpack.c.h.b16 %v154
        %v166 = vunpack.c.l.b16 %v155
        %v167 = vunpack.c.h.b16 %v155
        %v168 = vpack.c.b16 %v162, %v160
        %v169 = vpack.c.b16 %v163, %v161
        %v170 = vpack.c.b16 %v166, %v164
        %v171 = vpack.c.b16 %v167, %v165
        %vm176 = vcmask 261120
        %v178 = vsel %vm176, %v150, 0
        %v181 = vsel %vm176, %v151, 0
        %183 = vmatprep.subr.bf16.mxu0 %v169
        %184 = vmatpush1.bf16.msra.mxu0 %v168
        %185 = vmatprep.subr.bf16.mxu0 %v171
        %186 = vmatpush1.bf16.msra.mxu0 %v170
        %187 = vmatprep.subr.bf16.mxu0 0
        %188 = vmatpush1.bf16.msra.mxu0 0
        %189 = vmatprep.subr.bf16.mxu0 0
        %190 = vmatpush1.bf16.msra.mxu0 0
        %191 = vmatprep.subr.bf16.mxu0 0
        %192 = vmatpush1.bf16.msra.mxu0 0
        %193 = vmatprep.subr.bf16.mxu0 0
        %194 = vmatpush1.bf16.msra.mxu0 0
        %195 = vmatprep.subr.bf16.mxu0 0
        %196 = vmatpush1.bf16.msra.mxu0 0
        %197 = vmatprep.subr.bf16.mxu0 0
        %198 = vmatpush1.bf16.msra.mxu0 0
        %199 = vmatprep.subr.bf16.mxu0 0
        %200 = vmatpush1.bf16.msra.mxu0 0
        %201 = vmatprep.subr.bf16.mxu0 0
        %202 = vmatpush1.bf16.msra.mxu0 0
        %203 = vmatprep.subr.bf16.mxu0 0
        %204 = vmatpush1.bf16.msra.mxu0 0
        %205 = vmatprep.subr.bf16.mxu0 0
        %206 = vmatpush1.bf16.msra.mxu0 0
        %207 = vmatprep.subr.bf16.mxu0 0
        %208 = vmatpush1.bf16.msra.mxu0 0
        %209 = vmatprep.subr.bf16.mxu0 0
        %210 = vmatpush1.bf16.msra.mxu0 0
        %211 = vmatprep.subr.bf16.mxu0 0
        %212 = vmatpush1.bf16.msra.mxu0 0
        %213 = vmatprep.subr.bf16.mxu0 0
        %214 = vmatpush1.bf16.msra.mxu0 0
        %215 = vmatprep.mubr.bf16.mxu0 0
        %216 = vmatmul.mubr.bf16.gmra.mrb[0].mxu0 %v178
        %v217 = vpop.f32.mrb[0].mxu0
        %v218 = vadd.f32 0.0, %v217
        %v219 = vpop.f32.mrb[0].mxu0
        %v220 = vadd.f32 0.0, %v219
        %v221 = vpop.f32.mrb[0].mxu0
        %v222 = vadd.f32 0.0, %v221
        %v223 = vpop.f32.mrb[0].mxu0
        %v224 = vadd.f32 0.0, %v223
        %225 = vmatprep.mubr.bf16.mxu0 0
        %226 = vmatmul.mubr.bf16.gmra.mrb[0].mxu0 %v181
        %v227 = vpop.f32.mrb[0].mxu0
        %v228 = vadd.f32 0.0, %v227
        %v229 = vpop.f32.mrb[0].mxu0
        %v230 = vadd.f32 0.0, %v229
        %v231 = vpop.f32.mrb[0].mxu0
        %v232 = vadd.f32 0.0, %v231
        %v233 = vpop.f32.mrb[0].mxu0
        %v234 = vadd.f32 0.0, %v233
        %235 = vdwg.mxu0
        %v236 = vlaneseq
        %v237 = vshrl.u32 %v236, 7
        %v238 = vlaneseq
        %v239 = vand.u32 %v238, 127
        %vm240 = vcmp.gt.s32.totalorder %v239, %v237
        %v241 = vpack.c.bf16 %v218, %v218
        %v242 = vpack.c.bf16 %v222, %v222
        %v243 = vpack.c.bf16 %v228, %v228
        %v244 = vpack.c.bf16 %v232, %v232
        %v245 = vpack.c.bf16 %v220, %v220
        %v246 = vpack.c.bf16 %v224, %v224
        %v247 = vpack.c.bf16 %v230, %v230
        %v248 = vpack.c.bf16 %v234, %v234
        %250 = vrot.lane.b32.xlu0 %v241, 64
        %v251 = vpop.permute.xlu0 %250
        %vm252 = vcmask 130048
        %v254 = vsel %vm252, %v241, 0
        %v257 = vsel %vm252, %v251, 0
        %259 = vmatprep.subr.bf16.mxu0 0
        %260 = vmatpush1.bf16.xpose.msra.mxu0 %v257
        %261 = vmatprep.subr.bf16.mxu0 0
        %262 = vmatpush1.bf16.xpose.msra.mxu0 0
        %263 = vmatprep.subr.bf16.mxu0 0
        %264 = vmatpush1.bf16.xpose.msra.mxu0 0
        %265 = vmatprep.subr.bf16.mxu0 0
        %266 = vmatpush1.bf16.xpose.msra.mxu0 0
        %267 = vmatprep.subr.bf16.mxu0 0
        %268 = vmatpush1.bf16.xpose.msra.mxu0 0
        %269 = vmatprep.subr.bf16.mxu0 0
        %270 = vmatpush1.bf16.xpose.msra.mxu0 0
        %271 = vmatprep.subr.bf16.mxu0 0
        %272 = vmatpush1.bf16.xpose.msra.mxu0 0
        %273 = vmatprep.subr.bf16.mxu0 0
        %274 = vmatpush1.bf16.xpose.msra.mxu0 0
        %275 = vmatprep.subr.bf16.mxu0 0
        %276 = vmatpush1.bf16.xpose.msra.mxu0 0
        %277 = vmatprep.subr.bf16.mxu0 0
        %278 = vmatpush1.bf16.xpose.msra.mxu0 0
        %279 = vmatprep.subr.bf16.mxu0 0
        %280 = vmatpush1.bf16.xpose.msra.mxu0 0
        %281 = vmatprep.subr.bf16.mxu0 0
        %282 = vmatpush1.bf16.xpose.msra.mxu0 0
        %283 = vmatprep.subr.bf16.mxu0 0
        %284 = vmatpush1.bf16.xpose.msra.mxu0 0
        %285 = vmatprep.subr.bf16.mxu0 0
        %286 = vmatpush1.bf16.xpose.msra.mxu0 0
        %287 = vmatprep.subr.bf16.mxu0 0
        %288 = vmatpush1.bf16.xpose.msra.mxu0 0
        %289 = vmatprep.subr.bf16.mxu0 0
        %290 = vmatpush1.bf16.xpose.msra.mxu0 0
        %291 = vmatprep.mubr.bf16.mxu0 0
        %292 = vmatmul.mubr.bf16.gmra.mrb[0].mxu0 %v254
        %v293 = vpop.f32.mrb[0].mxu0
        %v294 = vadd.f32 0.0, %v293
        %v295 = vpop.f32.mrb[0].mxu0
        %v296 = vpop.f32.mrb[0].mxu0
        %v297 = vpop.f32.mrb[0].mxu0
        %298 = vdwg.mxu0
        %300 = vrot.lane.b32.xlu0 %v242, 64
        %v301 = vpop.permute.xlu0 %300
        %v303 = vsel %vm252, %v242, 0
        %v306 = vsel %vm252, %v301, 0
        %308 = vmatprep.subr.bf16.mxu0 0
        %309 = vmatpush1.bf16.xpose.msra.mxu0 %v306
        %310 = vmatprep.subr.bf16.mxu0 0
        %311 = vmatpush1.bf16.xpose.msra.mxu0 0
        %312 = vmatprep.subr.bf16.mxu0 0
        %313 = vmatpush1.bf16.xpose.msra.mxu0 0
        %314 = vmatprep.subr.bf16.mxu0 0
        %315 = vmatpush1.bf16.xpose.msra.mxu0 0
        %316 = vmatprep.subr.bf16.mxu0 0
        %317 = vmatpush1.bf16.xpose.msra.mxu0 0
        %318 = vmatprep.subr.bf16.mxu0 0
        %319 = vmatpush1.bf16.xpose.msra.mxu0 0
        %320 = vmatprep.subr.bf16.mxu0 0
        %321 = vmatpush1.bf16.xpose.msra.mxu0 0
        %322 = vmatprep.subr.bf16.mxu0 0
        %323 = vmatpush1.bf16.xpose.msra.mxu0 0
        %324 = vmatprep.subr.bf16.mxu0 0
        %325 = vmatpush1.bf16.xpose.msra.mxu0 0
        %326 = vmatprep.subr.bf16.mxu0 0
        %327 = vmatpush1.bf16.xpose.msra.mxu0 0
        %328 = vmatprep.subr.bf16.mxu0 0
        %329 = vmatpush1.bf16.xpose.msra.mxu0 0
        %330 = vmatprep.subr.bf16.mxu0 0
        %331 = vmatpush1.bf16.xpose.msra.mxu0 0
        %332 = vmatprep.subr.bf16.mxu0 0
        %333 = vmatpush1.bf16.xpose.msra.mxu0 0
        %334 = vmatprep.subr.bf16.mxu0 0
        %335 = vmatpush1.bf16.xpose.msra.mxu0 0
        %336 = vmatprep.subr.bf16.mxu0 0
        %337 = vmatpush1.bf16.xpose.msra.mxu0 0
        %338 = vmatprep.subr.bf16.mxu0 0
        %339 = vmatpush1.bf16.xpose.msra.mxu0 0
        %340 = vmatprep.mubr.bf16.mxu0 0
        %341 = vmatmul.mubr.bf16.gmra.mrb[0].mxu0 %v303
        %v342 = vpop.f32.mrb[0].mxu0
        %v343 = vadd.f32 0.0, %v342
        %v344 = vpop.f32.mrb[0].mxu0
        %v345 = vpop.f32.mrb[0].mxu0
        %v346 = vpop.f32.mrb[0].mxu0
        %347 = vdwg.mxu0
        %349 = vrot.lane.b32.xlu0 %v243, 64
        %v350 = vpop.permute.xlu0 %349
        %v352 = vsel %vm252, %v243, 0
        %v355 = vsel %vm252, %v350, 0
        %357 = vmatprep.subr.bf16.mxu0 0
        %358 = vmatpush1.bf16.xpose.msra.mxu0 %v355
        %359 = vmatprep.subr.bf16.mxu0 0
        %360 = vmatpush1.bf16.xpose.msra.mxu0 0
        %361 = vmatprep.subr.bf16.mxu0 0
        %362 = vmatpush1.bf16.xpose.msra.mxu0 0
        %363 = vmatprep.subr.bf16.mxu0 0
        %364 = vmatpush1.bf16.xpose.msra.mxu0 0
        %365 = vmatprep.subr.bf16.mxu0 0
        %366 = vmatpush1.bf16.xpose.msra.mxu0 0
        %367 = vmatprep.subr.bf16.mxu0 0
        %368 = vmatpush1.bf16.xpose.msra.mxu0 0
        %369 = vmatprep.subr.bf16.mxu0 0
        %370 = vmatpush1.bf16.xpose.msra.mxu0 0
        %371 = vmatprep.subr.bf16.mxu0 0
        %372 = vmatpush1.bf16.xpose.msra.mxu0 0
        %373 = vmatprep.subr.bf16.mxu0 0
        %374 = vmatpush1.bf16.xpose.msra.mxu0 0
        %375 = vmatprep.subr.bf16.mxu0 0
        %376 = vmatpush1.bf16.xpose.msra.mxu0 0
        %377 = vmatprep.subr.bf16.mxu0 0
        %378 = vmatpush1.bf16.xpose.msra.mxu0 0
        %379 = vmatprep.subr.bf16.mxu0 0
        %380 = vmatpush1.bf16.xpose.msra.mxu0 0
        %381 = vmatprep.subr.bf16.mxu0 0
        %382 = vmatpush1.bf16.xpose.msra.mxu0 0
        %383 = vmatprep.subr.bf16.mxu0 0
        %384 = vmatpush1.bf16.xpose.msra.mxu0 0
        %385 = vmatprep.subr.bf16.mxu0 0
        %386 = vmatpush1.bf16.xpose.msra.mxu0 0
        %387 = vmatprep.subr.bf16.mxu0 0
        %388 = vmatpush1.bf16.xpose.msra.mxu0 0
        %389 = vmatprep.mubr.bf16.mxu0 0
        %390 = vmatmul.mubr.bf16.gmra.mrb[0].mxu0 %v352
        %v391 = vpop.f32.mrb[0].mxu0
        %v392 = vadd.f32 0.0, %v391
        %v393 = vpop.f32.mrb[0].mxu0
        %v394 = vpop.f32.mrb[0].mxu0
        %v395 = vpop.f32.mrb[0].mxu0
        %396 = vdwg.mxu0
        %398 = vrot.lane.b32.xlu0 %v244, 64
        %v399 = vpop.permute.xlu0 %398
        %v401 = vsel %vm252, %v244, 0
        %v404 = vsel %vm252, %v399, 0
        %406 = vmatprep.subr.bf16.mxu0 0
        %407 = vmatpush1.bf16.xpose.msra.mxu0 %v404
        %408 = vmatprep.subr.bf16.mxu0 0
        %409 = vmatpush1.bf16.xpose.msra.mxu0 0
        %410 = vmatprep.subr.bf16.mxu0 0
        %411 = vmatpush1.bf16.xpose.msra.mxu0 0
        %412 = vmatprep.subr.bf16.mxu0 0
        %413 = vmatpush1.bf16.xpose.msra.mxu0 0
        %414 = vmatprep.subr.bf16.mxu0 0
        %415 = vmatpush1.bf16.xpose.msra.mxu0 0
        %416 = vmatprep.subr.bf16.mxu0 0
        %417 = vmatpush1.bf16.xpose.msra.mxu0 0
        %418 = vmatprep.subr.bf16.mxu0 0
        %419 = vmatpush1.bf16.xpose.msra.mxu0 0
        %420 = vmatprep.subr.bf16.mxu0 0
        %421 = vmatpush1.bf16.xpose.msra.mxu0 0
        %422 = vmatprep.subr.bf16.mxu0 0
        %423 = vmatpush1.bf16.xpose.msra.mxu0 0
        %424 = vmatprep.subr.bf16.mxu0 0
        %425 = vmatpush1.bf16.xpose.msra.mxu0 0
        %426 = vmatprep.subr.bf16.mxu0 0
        %427 = vmatpush1.bf16.xpose.msra.mxu0 0
        %428 = vmatprep.subr.bf16.mxu0 0
        %429 = vmatpush1.bf16.xpose.msra.mxu0 0
        %430 = vmatprep.subr.bf16.mxu0 0
        %431 = vmatpush1.bf16.xpose.msra.mxu0 0
        %432 = vmatprep.subr.bf16.mxu0 0
        %433 = vmatpush1.bf16.xpose.msra.mxu0 0
        %434 = vmatprep.subr.bf16.mxu0 0
        %435 = vmatpush1.bf16.xpose.msra.mxu0 0
        %436 = vmatprep.subr.bf16.mxu0 0
        %437 = vmatpush1.bf16.xpose.msra.mxu0 0
        %438 = vmatprep.mubr.bf16.mxu0 0
        %439 = vmatmul.mubr.bf16.gmra.mrb[0].mxu0 %v401
        %v440 = vpop.f32.mrb[0].mxu0
        %v441 = vadd.f32 0.0, %v440
        %v442 = vpop.f32.mrb[0].mxu0
        %v443 = vpop.f32.mrb[0].mxu0
        %v444 = vpop.f32.mrb[0].mxu0
        %445 = vdwg.mxu0
        %v446 = vsel %vm240, 1, 0
        %vm447 = vcmp.eq.s32.totalorder %v446, 1
        %v448 = vsel %vm447, -inf, %v294
        %v449 = vsel %vm447, -inf, %v343
        %v450 = vsel %vm447, -inf, %v392
        %v451 = vsel %vm447, -inf, %v441
        %vm452 = vcmask 64512
        %v453 = vsel %vm452, %v448, -inf
        %454 = vmax.xlane.f32.xlu0 %v453
        %v455 = vpop.xlane.xlu0 %454
        %v456 = vsel %vm452, %v449, -inf
        %457 = vmax.xlane.f32.xlu0 %v456
        %v458 = vpop.xlane.xlu0 %457
        %v459 = vsel %vm452, %v450, -inf
        %460 = vmax.xlane.f32.xlu0 %v459
        %v461 = vpop.xlane.xlu0 %460
        %v462 = vsel %vm452, %v451, -inf
        %463 = vmax.xlane.f32.xlu0 %v462
        %v464 = vpop.xlane.xlu0 %463
        %v465 = vsub.f32 %v448, %v455
        %v466 = vsub.f32 %v449, %v458
        %v467 = vsub.f32 %v450, %v461
        %v468 = vsub.f32 %v451, %v464
        %v469 = vmul.f32 %v465, 1.442695
        %v470 = vpow.pop %v469
        %v471 = vmul.f32 %v466, 1.442695
        %v472 = vpow.pop %v471
        %v473 = vmul.f32 %v467, 1.442695
        %v474 = vpow.pop %v473
        %v475 = vmul.f32 %v468, 1.442695
        %v476 = vpow.pop %v475
        %v477 = vsel %vm452, %v470, 0.0
        %478 = vadd.xlane.f32.xlu0 %v477
        %v479 = vpop.xlane.xlu0 %478
        %v480 = vsel %vm452, %v472, 0.0
        %481 = vadd.xlane.f32.xlu0 %v480
        %v482 = vpop.xlane.xlu0 %481
        %v483 = vsel %vm452, %v474, 0.0
        %484 = vadd.xlane.f32.xlu0 %v483
        %v485 = vpop.xlane.xlu0 %484
        %v486 = vsel %vm452, %v476, 0.0
        %487 = vadd.xlane.f32.xlu0 %v486
        %v488 = vpop.xlane.xlu0 %487
        %v489 = vpack.c.bf16 %v470, %v470
        %v490 = vpack.c.bf16 %v472, %v472
        %v491 = vpack.c.bf16 %v474, %v474
        %v492 = vpack.c.bf16 %v476, %v476
        %v494 = vsel %vm452, %v489, 0
        %vm496 = vcmask 1043456
        %v498 = vsel %vm496, %v245, 0
        %500 = vmatprep.subr.bf16.mxu0 0
        %501 = vmatpush1.bf16.msra.mxu0 %v498
        %502 = vmatprep.subr.bf16.mxu0 0
        %503 = vmatpush1.bf16.msra.mxu0 0
        %504 = vmatprep.subr.bf16.mxu0 0
        %505 = vmatpush1.bf16.msra.mxu0 0
        %506 = vmatprep.subr.bf16.mxu0 0
        %507 = vmatpush1.bf16.msra.mxu0 0
        %508 = vmatprep.subr.bf16.mxu0 0
        %509 = vmatpush1.bf16.msra.mxu0 0
        %510 = vmatprep.subr.bf16.mxu0 0
        %511 = vmatpush1.bf16.msra.mxu0 0
        %512 = vmatprep.subr.bf16.mxu0 0
        %513 = vmatpush1.bf16.msra.mxu0 0
        %514 = vmatprep.subr.bf16.mxu0 0
        %515 = vmatpush1.bf16.msra.mxu0 0
        %516 = vmatprep.subr.bf16.mxu0 0
        %517 = vmatpush1.bf16.msra.mxu0 0
        %518 = vmatprep.subr.bf16.mxu0 0
        %519 = vmatpush1.bf16.msra.mxu0 0
        %520 = vmatprep.subr.bf16.mxu0 0
        %521 = vmatpush1.bf16.msra.mxu0 0
        %522 = vmatprep.subr.bf16.mxu0 0
        %523 = vmatpush1.bf16.msra.mxu0 0
        %524 = vmatprep.subr.bf16.mxu0 0
        %525 = vmatpush1.bf16.msra.mxu0 0
        %526 = vmatprep.subr.bf16.mxu0 0
        %527 = vmatpush1.bf16.msra.mxu0 0
        %528 = vmatprep.subr.bf16.mxu0 0
        %529 = vmatpush1.bf16.msra.mxu0 0
        %530 = vmatprep.subr.bf16.mxu0 0
        %531 = vmatpush1.bf16.msra.mxu0 0
        %532 = vmatprep.mubr.bf16.mxu0 0
        %533 = vmatmul.mubr.bf16.gmra.mrb[0].mxu0 %v494
        %v534 = vpop.f32.mrb[0].mxu0
        %v535 = vadd.f32 0.0, %v534
        %v536 = vpop.f32.mrb[0].mxu0
        %v537 = vpop.f32.mrb[0].mxu0
        %v538 = vpop.f32.mrb[0].mxu0
        %539 = vdwg.mxu0
        %v541 = vsel %vm452, %v490, 0
        %v544 = vsel %vm496, %v246, 0
        %546 = vmatprep.subr.bf16.mxu0 0
        %547 = vmatpush1.bf16.msra.mxu0 %v544
        %548 = vmatprep.subr.bf16.mxu0 0
        %549 = vmatpush1.bf16.msra.mxu0 0
        %550 = vmatprep.subr.bf16.mxu0 0
        %551 = vmatpush1.bf16.msra.mxu0 0
        %552 = vmatprep.subr.bf16.mxu0 0
        %553 = vmatpush1.bf16.msra.mxu0 0
        %554 = vmatprep.subr.bf16.mxu0 0
        %555 = vmatpush1.bf16.msra.mxu0 0
        %556 = vmatprep.subr.bf16.mxu0 0
        %557 = vmatpush1.bf16.msra.mxu0 0
        %558 = vmatprep.subr.bf16.mxu0 0
        %559 = vmatpush1.bf16.msra.mxu0 0
        %560 = vmatprep.subr.bf16.mxu0 0
        %561 = vmatpush1.bf16.msra.mxu0 0
        %562 = vmatprep.subr.bf16.mxu0 0
        %563 = vmatpush1.bf16.msra.mxu0 0
        %564 = vmatprep.subr.bf16.mxu0 0
        %565 = vmatpush1.bf16.msra.mxu0 0
        %566 = vmatprep.subr.bf16.mxu0 0
        %567 = vmatpush1.bf16.msra.mxu0 0
        %568 = vmatprep.subr.bf16.mxu0 0
        %569 = vmatpush1.bf16.msra.mxu0 0
        %570 = vmatprep.subr.bf16.mxu0 0
        %571 = vmatpush1.bf16.msra.mxu0 0
        %572 = vmatprep.subr.bf16.mxu0 0
        %573 = vmatpush1.bf16.msra.mxu0 0
        %574 = vmatprep.subr.bf16.mxu0 0
        %575 = vmatpush1.bf16.msra.mxu0 0
        %576 = vmatprep.subr.bf16.mxu0 0
        %577 = vmatpush1.bf16.msra.mxu0 0
        %578 = vmatprep.mubr.bf16.mxu0 0
        %579 = vmatmul.mubr.bf16.gmra.mrb[0].mxu0 %v541
        %v580 = vpop.f32.mrb[0].mxu0
        %v581 = vadd.f32 0.0, %v580
        %v582 = vpop.f32.mrb[0].mxu0
        %v583 = vpop.f32.mrb[0].mxu0
        %v584 = vpop.f32.mrb[0].mxu0
        %585 = vdwg.mxu0
        %v587 = vsel %vm452, %v491, 0
        %v590 = vsel %vm496, %v247, 0
        %592 = vmatprep.subr.bf16.mxu0 0
        %593 = vmatpush1.bf16.msra.mxu0 %v590
        %594 = vmatprep.subr.bf16.mxu0 0
        %595 = vmatpush1.bf16.msra.mxu0 0
        %596 = vmatprep.subr.bf16.mxu0 0
        %597 = vmatpush1.bf16.msra.mxu0 0
        %598 = vmatprep.subr.bf16.mxu0 0
        %599 = vmatpush1.bf16.msra.mxu0 0
        %600 = vmatprep.subr.bf16.mxu0 0
        %601 = vmatpush1.bf16.msra.mxu0 0
        %602 = vmatprep.subr.bf16.mxu0 0
        %603 = vmatpush1.bf16.msra.mxu0 0
        %604 = vmatprep.subr.bf16.mxu0 0
        %605 = vmatpush1.bf16.msra.mxu0 0
        %606 = vmatprep.subr.bf16.mxu0 0
        %607 = vmatpush1.bf16.msra.mxu0 0
        %608 = vmatprep.subr.bf16.mxu0 0
        %609 = vmatpush1.bf16.msra.mxu0 0
        %610 = vmatprep.subr.bf16.mxu0 0
        %611 = vmatpush1.bf16.msra.mxu0 0
        %612 = vmatprep.subr.bf16.mxu0 0
        %613 = vmatpush1.bf16.msra.mxu0 0
        %614 = vmatprep.subr.bf16.mxu0 0
        %615 = vmatpush1.bf16.msra.mxu0 0
        %616 = vmatprep.subr.bf16.mxu0 0
        %617 = vmatpush1.bf16.msra.mxu0 0
        %618 = vmatprep.subr.bf16.mxu0 0
        %619 = vmatpush1.bf16.msra.mxu0 0
        %620 = vmatprep.subr.bf16.mxu0 0
        %621 = vmatpush1.bf16.msra.mxu0 0
        %622 = vmatprep.subr.bf16.mxu0 0
        %623 = vmatpush1.bf16.msra.mxu0 0
        %624 = vmatprep.mubr.bf16.mxu0 0
        %625 = vmatmul.mubr.bf16.gmra.mrb[0].mxu0 %v587
        %v626 = vpop.f32.mrb[0].mxu0
        %v627 = vadd.f32 0.0, %v626
        %v628 = vpop.f32.mrb[0].mxu0
        %v629 = vpop.f32.mrb[0].mxu0
        %v630 = vpop.f32.mrb[0].mxu0
        %631 = vdwg.mxu0
        %v633 = vsel %vm452, %v492, 0
        %v636 = vsel %vm496, %v248, 0
        %638 = vmatprep.subr.bf16.mxu0 0
        %639 = vmatpush1.bf16.msra.mxu0 %v636
        %640 = vmatprep.subr.bf16.mxu0 0
        %641 = vmatpush1.bf16.msra.mxu0 0
        %642 = vmatprep.subr.bf16.mxu0 0
        %643 = vmatpush1.bf16.msra.mxu0 0
        %644 = vmatprep.subr.bf16.mxu0 0
        %645 = vmatpush1.bf16.msra.mxu0 0
        %646 = vmatprep.subr.bf16.mxu0 0
        %647 = vmatpush1.bf16.msra.mxu0 0
        %648 = vmatprep.subr.bf16.mxu0 0
        %649 = vmatpush1.bf16.msra.mxu0 0
        %650 = vmatprep.subr.bf16.mxu0 0
        %651 = vmatpush1.bf16.msra.mxu0 0
        %652 = vmatprep.subr.bf16.mxu0 0
        %653 = vmatpush1.bf16.msra.mxu0 0
        %654 = vmatprep.subr.bf16.mxu0 0
        %655 = vmatpush1.bf16.msra.mxu0 0
        %656 = vmatprep.subr.bf16.mxu0 0
        %657 = vmatpush1.bf16.msra.mxu0 0
        %658 = vmatprep.subr.bf16.mxu0 0
        %659 = vmatpush1.bf16.msra.mxu0 0
        %660 = vmatprep.subr.bf16.mxu0 0
        %661 = vmatpush1.bf16.msra.mxu0 0
        %662 = vmatprep.subr.bf16.mxu0 0
        %663 = vmatpush1.bf16.msra.mxu0 0
        %664 = vmatprep.subr.bf16.mxu0 0
        %665 = vmatpush1.bf16.msra.mxu0 0
        %666 = vmatprep.subr.bf16.mxu0 0
        %667 = vmatpush1.bf16.msra.mxu0 0
        %668 = vmatprep.subr.bf16.mxu0 0
        %669 = vmatpush1.bf16.msra.mxu0 0
        %670 = vmatprep.mubr.bf16.mxu0 0
        %671 = vmatmul.mubr.bf16.gmra.mrb[0].mxu0 %v633
        %v672 = vpop.f32.mrb[0].mxu0
        %v673 = vadd.f32 0.0, %v672
        %v674 = vpop.f32.mrb[0].mxu0
        %v675 = vpop.f32.mrb[0].mxu0
        %v676 = vpop.f32.mrb[0].mxu0
        %677 = vdwg.mxu0
        %v678 = vrcp.pop %v479
        %v679 = vrcp.pop %v482
        %v680 = vrcp.pop %v485
        %v681 = vrcp.pop %v488
        %v682 = vmul.f32 %v535, %v678
        %v683 = vmul.f32 %v581, %v679
        %v684 = vmul.f32 %v627, %v680
        %v685 = vmul.f32 %v673, %v681
        %686 = vrot.lane.b32.xlu0 %v241, 112
        %v687 = vpop.permute.xlu0 %686
        %688 = vrot.lane.b32.xlu0 %v241, 48
        %v689 = vpop.permute.xlu0 %688
        %v691 = vsel %vm252, %v687, 0
        %v694 = vsel %vm252, %v689, 0
        %696 = vmatprep.subr.bf16.mxu0 0
        %697 = vmatpush1.bf16.xpose.msra.mxu0 %v694
        %698 = vmatprep.subr.bf16.mxu0 0
        %699 = vmatpush1.bf16.xpose.msra.mxu0 0
        %700 = vmatprep.subr.bf16.mxu0 0
        %701 = vmatpush1.bf16.xpose.msra.mxu0 0
        %702 = vmatprep.subr.bf16.mxu0 0
        %703 = vmatpush1.bf16.xpose.msra.mxu0 0
        %704 = vmatprep.subr.bf16.mxu0 0
        %705 = vmatpush1.bf16.xpose.msra.mxu0 0
        %706 = vmatprep.subr.bf16.mxu0 0
        %707 = vmatpush1.bf16.xpose.msra.mxu0 0
        %708 = vmatprep.subr.bf16.mxu0 0
        %709 = vmatpush1.bf16.xpose.msra.mxu0 0
        %710 = vmatprep.subr.bf16.mxu0 0
        %711 = vmatpush1.bf16.xpose.msra.mxu0 0
        %712 = vmatprep.subr.bf16.mxu0 0
        %713 = vmatpush1.bf16.xpose.msra.mxu0 0
        %714 = vmatprep.subr.bf16.mxu0 0
        %715 = vmatpush1.bf16.xpose.msra.mxu0 0
        %716 = vmatprep.subr.bf16.mxu0 0
        %717 = vmatpush1.bf16.xpose.msra.mxu0 0
        %718 = vmatprep.subr.bf16.mxu0 0
        %719 = vmatpush1.bf16.xpose.msra.mxu0 0
        %720 = vmatprep.subr.bf16.mxu0 0
        %721 = vmatpush1.bf16.xpose.msra.mxu0 0
        %722 = vmatprep.subr.bf16.mxu0 0
        %723 = vmatpush1.bf16.xpose.msra.mxu0 0
        %724 = vmatprep.subr.bf16.mxu0 0
        %725 = vmatpush1.bf16.xpose.msra.mxu0 0
        %726 = vmatprep.subr.bf16.mxu0 0
        %727 = vmatpush1.bf16.xpose.msra.mxu0 0
        %728 = vmatprep.mubr.bf16.mxu0 0
        %729 = vmatmul.mubr.bf16.gmra.mrb[0].mxu0 %v691
        %v730 = vpop.f32.mrb[0].mxu0
        %v731 = vadd.f32 0.0, %v730
        %v732 = vpop.f32.mrb[0].mxu0
        %v733 = vpop.f32.mrb[0].mxu0
        %v734 = vpop.f32.mrb[0].mxu0
        %735 = vdwg.mxu0
        %736 = vrot.lane.b32.xlu0 %v242, 112
        %v737 = vpop.permute.xlu0 %736
        %738 = vrot.lane.b32.xlu0 %v242, 48
        %v739 = vpop.permute.xlu0 %738
        %v741 = vsel %vm252, %v737, 0
        %v744 = vsel %vm252, %v739, 0
        %746 = vmatprep.subr.bf16.mxu0 0
        %747 = vmatpush1.bf16.xpose.msra.mxu0 %v744
        %748 = vmatprep.subr.bf16.mxu0 0
        %749 = vmatpush1.bf16.xpose.msra.mxu0 0
        %750 = vmatprep.subr.bf16.mxu0 0
        %751 = vmatpush1.bf16.xpose.msra.mxu0 0
        %752 = vmatprep.subr.bf16.mxu0 0
        %753 = vmatpush1.bf16.xpose.msra.mxu0 0
        %754 = vmatprep.subr.bf16.mxu0 0
        %755 = vmatpush1.bf16.xpose.msra.mxu0 0
        %756 = vmatprep.subr.bf16.mxu0 0
        %757 = vmatpush1.bf16.xpose.msra.mxu0 0
        %758 = vmatprep.subr.bf16.mxu0 0
        %759 = vmatpush1.bf16.xpose.msra.mxu0 0
        %760 = vmatprep.subr.bf16.mxu0 0
        %761 = vmatpush1.bf16.xpose.msra.mxu0 0
        %762 = vmatprep.subr.bf16.mxu0 0
        %763 = vmatpush1.bf16.xpose.msra.mxu0 0
        %764 = vmatprep.subr.bf16.mxu0 0
        %765 = vmatpush1.bf16.xpose.msra.mxu0 0
        %766 = vmatprep.subr.bf16.mxu0 0
        %767 = vmatpush1.bf16.xpose.msra.mxu0 0
        %768 = vmatprep.subr.bf16.mxu0 0
        %769 = vmatpush1.bf16.xpose.msra.mxu0 0
        %770 = vmatprep.subr.bf16.mxu0 0
        %771 = vmatpush1.bf16.xpose.msra.mxu0 0
        %772 = vmatprep.subr.bf16.mxu0 0
        %773 = vmatpush1.bf16.xpose.msra.mxu0 0
        %774 = vmatprep.subr.bf16.mxu0 0
        %775 = vmatpush1.bf16.xpose.msra.mxu0 0
        %776 = vmatprep.subr.bf16.mxu0 0
        %777 = vmatpush1.bf16.xpose.msra.mxu0 0
        %778 = vmatprep.mubr.bf16.mxu0 0
        %779 = vmatmul.mubr.bf16.gmra.mrb[0].mxu0 %v741
        %v780 = vpop.f32.mrb[0].mxu0
        %v781 = vadd.f32 0.0, %v780
        %v782 = vpop.f32.mrb[0].mxu0
        %v783 = vpop.f32.mrb[0].mxu0
        %v784 = vpop.f32.mrb[0].mxu0
        %785 = vdwg.mxu0
        %786 = vrot.lane.b32.xlu0 %v243, 112
        %v787 = vpop.permute.xlu0 %786
        %788 = vrot.lane.b32.xlu0 %v243, 48
        %v789 = vpop.permute.xlu0 %788
        %v791 = vsel %vm252, %v787, 0
        %v794 = vsel %vm252, %v789, 0
        %796 = vmatprep.subr.bf16.mxu0 0
        %797 = vmatpush1.bf16.xpose.msra.mxu0 %v794
        %798 = vmatprep.subr.bf16.mxu0 0
        %799 = vmatpush1.bf16.xpose.msra.mxu0 0
        %800 = vmatprep.subr.bf16.mxu0 0
        %801 = vmatpush1.bf16.xpose.msra.mxu0 0
        %802 = vmatprep.subr.bf16.mxu0 0
        %803 = vmatpush1.bf16.xpose.msra.mxu0 0
        %804 = vmatprep.subr.bf16.mxu0 0
        %805 = vmatpush1.bf16.xpose.msra.mxu0 0
        %806 = vmatprep.subr.bf16.mxu0 0
        %807 = vmatpush1.bf16.xpose.msra.mxu0 0
        %808 = vmatprep.subr.bf16.mxu0 0
        %809 = vmatpush1.bf16.xpose.msra.mxu0 0
        %810 = vmatprep.subr.bf16.mxu0 0
        %811 = vmatpush1.bf16.xpose.msra.mxu0 0
        %812 = vmatprep.subr.bf16.mxu0 0
        %813 = vmatpush1.bf16.xpose.msra.mxu0 0
        %814 = vmatprep.subr.bf16.mxu0 0
        %815 = vmatpush1.bf16.xpose.msra.mxu0 0
        %816 = vmatprep.subr.bf16.mxu0 0
        %817 = vmatpush1.bf16.xpose.msra.mxu0 0
        %818 = vmatprep.subr.bf16.mxu0 0
        %819 = vmatpush1.bf16.xpose.msra.mxu0 0
        %820 = vmatprep.subr.bf16.mxu0 0
        %821 = vmatpush1.bf16.xpose.msra.mxu0 0
        %822 = vmatprep.subr.bf16.mxu0 0
        %823 = vmatpush1.bf16.xpose.msra.mxu0 0
        %824 = vmatprep.subr.bf16.mxu0 0
        %825 = vmatpush1.bf16.xpose.msra.mxu0 0
        %826 = vmatprep.subr.bf16.mxu0 0
        %827 = vmatpush1.bf16.xpose.msra.mxu0 0
        %828 = vmatprep.mubr.bf16.mxu0 0
        %829 = vmatmul.mubr.bf16.gmra.mrb[0].mxu0 %v791
        %v830 = vpop.f32.mrb[0].mxu0
        %v831 = vadd.f32 0.0, %v830
        %v832 = vpop.f32.mrb[0].mxu0
        %v833 = vpop.f32.mrb[0].mxu0
        %v834 = vpop.f32.mrb[0].mxu0
        %835 = vdwg.mxu0
        %836 = vrot.lane.b32.xlu0 %v244, 112
        %v837 = vpop.permute.xlu0 %836
        %838 = vrot.lane.b32.xlu0 %v244, 48
        %v839 = vpop.permute.xlu0 %838
        %v841 = vsel %vm252, %v837, 0
        %v844 = vsel %vm252, %v839, 0
        %846 = vmatprep.subr.bf16.mxu0 0
        %847 = vmatpush1.bf16.xpose.msra.mxu0 %v844
        %848 = vmatprep.subr.bf16.mxu0 0
        %849 = vmatpush1.bf16.xpose.msra.mxu0 0
        %850 = vmatprep.subr.bf16.mxu0 0
        %851 = vmatpush1.bf16.xpose.msra.mxu0 0
        %852 = vmatprep.subr.bf16.mxu0 0
        %853 = vmatpush1.bf16.xpose.msra.mxu0 0
        %854 = vmatprep.subr.bf16.mxu0 0
        %855 = vmatpush1.bf16.xpose.msra.mxu0 0
        %856 = vmatprep.subr.bf16.mxu0 0
        %857 = vmatpush1.bf16.xpose.msra.mxu0 0
        %858 = vmatprep.subr.bf16.mxu0 0
        %859 = vmatpush1.bf16.xpose.msra.mxu0 0
        %860 = vmatprep.subr.bf16.mxu0 0
        %861 = vmatpush1.bf16.xpose.msra.mxu0 0
        %862 = vmatprep.subr.bf16.mxu0 0
        %863 = vmatpush1.bf16.xpose.msra.mxu0 0
        %864 = vmatprep.subr.bf16.mxu0 0
        %865 = vmatpush1.bf16.xpose.msra.mxu0 0
        %866 = vmatprep.subr.bf16.mxu0 0
        %867 = vmatpush1.bf16.xpose.msra.mxu0 0
        %868 = vmatprep.subr.bf16.mxu0 0
        %869 = vmatpush1.bf16.xpose.msra.mxu0 0
        %870 = vmatprep.subr.bf16.mxu0 0
        %871 = vmatpush1.bf16.xpose.msra.mxu0 0
        %872 = vmatprep.subr.bf16.mxu0 0
        %873 = vmatpush1.bf16.xpose.msra.mxu0 0
        %874 = vmatprep.subr.bf16.mxu0 0
        %875 = vmatpush1.bf16.xpose.msra.mxu0 0
        %876 = vmatprep.subr.bf16.mxu0 0
        %877 = vmatpush1.bf16.xpose.msra.mxu0 0
        %878 = vmatprep.mubr.bf16.mxu0 0
        %879 = vmatmul.mubr.bf16.gmra.mrb[0].mxu0 %v841
        %v880 = vpop.f32.mrb[0].mxu0
        %v881 = vadd.f32 0.0, %v880
        %v882 = vpop.f32.mrb[0].mxu0
        %v883 = vpop.f32.mrb[0].mxu0
        %v884 = vpop.f32.mrb[0].mxu0
        %885 = vdwg.mxu0
        %v886 = vsel %vm447, -inf, %v731
        %v887 = vsel %vm447, -inf, %v781
        %v888 = vsel %vm447, -inf, %v831
        %v889 = vsel %vm447, -inf, %v881
        %v890 = vsel %vm452, %v886, -inf
        %891 = vmax.xlane.f32.xlu0 %v890
        %v892 = vpop.xlane.xlu0 %891
        %v893 = vsel %vm452, %v887, -inf
        %894 = vmax.xlane.f32.xlu0 %v893
        %v895 = vpop.xlane.xlu0 %894
        %v896 = vsel %vm452, %v888, -inf
        %897 = vmax.xlane.f32.xlu0 %v896
        %v898 = vpop.xlane.xlu0 %897
        %v899 = vsel %vm452, %v889, -inf
        %900 = vmax.xlane.f32.xlu0 %v899
        %v901 = vpop.xlane.xlu0 %900
        %v902 = vsub.f32 %v886, %v892
        %v903 = vsub.f32 %v887, %v895
        %v904 = vsub.f32 %v888, %v898
        %v905 = vsub.f32 %v889, %v901
        %v906 = vmul.f32 %v902, 1.442695
        %v907 = vpow.pop %v906
        %v908 = vmul.f32 %v903, 1.442695
        %v909 = vpow.pop %v908
        %v910 = vmul.f32 %v904, 1.442695
        %v911 = vpow.pop %v910
        %v912 = vmul.f32 %v905, 1.442695
        %v913 = vpow.pop %v912
        %v914 = vsel %vm452, %v907, 0.0
        %915 = vadd.xlane.f32.xlu0 %v914
        %v916 = vpop.xlane.xlu0 %915
        %v917 = vsel %vm452, %v909, 0.0
        %918 = vadd.xlane.f32.xlu0 %v917
        %v919 = vpop.xlane.xlu0 %918
        %v920 = vsel %vm452, %v911, 0.0
        %921 = vadd.xlane.f32.xlu0 %v920
        %v922 = vpop.xlane.xlu0 %921
        %v923 = vsel %vm452, %v913, 0.0
        %924 = vadd.xlane.f32.xlu0 %v923
        %v925 = vpop.xlane.xlu0 %924
        %v926 = vpack.c.bf16 %v907, %v907
        %v927 = vpack.c.bf16 %v909, %v909
        %v928 = vpack.c.bf16 %v911, %v911
        %v929 = vpack.c.bf16 %v913, %v913
        %931 = vrot.lane.b32.xlu0 %v245, 112
        %v932 = vpop.permute.xlu0 %931
        %v934 = vsel %vm452, %v926, 0
        %v937 = vsel %vm496, %v932, 0
        %939 = vmatprep.subr.bf16.mxu0 0
        %940 = vmatpush1.bf16.msra.mxu0 %v937
        %941 = vmatprep.subr.bf16.mxu0 0
        %942 = vmatpush1.bf16.msra.mxu0 0
        %943 = vmatprep.subr.bf16.mxu0 0
        %944 = vmatpush1.bf16.msra.mxu0 0
        %945 = vmatprep.subr.bf16.mxu0 0
        %946 = vmatpush1.bf16.msra.mxu0 0
        %947 = vmatprep.subr.bf16.mxu0 0
        %948 = vmatpush1.bf16.msra.mxu0 0
        %949 = vmatprep.subr.bf16.mxu0 0
        %950 = vmatpush1.bf16.msra.mxu0 0
        %951 = vmatprep.subr.bf16.mxu0 0
        %952 = vmatpush1.bf16.msra.mxu0 0
        %953 = vmatprep.subr.bf16.mxu0 0
        %954 = vmatpush1.bf16.msra.mxu0 0
        %955 = vmatprep.subr.bf16.mxu0 0
        %956 = vmatpush1.bf16.msra.mxu0 0
        %957 = vmatprep.subr.bf16.mxu0 0
        %958 = vmatpush1.bf16.msra.mxu0 0
        %959 = vmatprep.subr.bf16.mxu0 0
        %960 = vmatpush1.bf16.msra.mxu0 0
        %961 = vmatprep.subr.bf16.mxu0 0
        %962 = vmatpush1.bf16.msra.mxu0 0
        %963 = vmatprep.subr.bf16.mxu0 0
        %964 = vmatpush1.bf16.msra.mxu0 0
        %965 = vmatprep.subr.bf16.mxu0 0
        %966 = vmatpush1.bf16.msra.mxu0 0
        %967 = vmatprep.subr.bf16.mxu0 0
        %968 = vmatpush1.bf16.msra.mxu0 0
        %969 = vmatprep.subr.bf16.mxu0 0
        %970 = vmatpush1.bf16.msra.mxu0 0
        %971 = vmatprep.mubr.bf16.mxu0 0
        %972 = vmatmul.mubr.bf16.gmra.mrb[0].mxu0 %v934
        %v973 = vpop.f32.mrb[0].mxu0
        %v974 = vadd.f32 0.0, %v973
        %v975 = vpop.f32.mrb[0].mxu0
        %v976 = vpop.f32.mrb[0].mxu0
        %v977 = vpop.f32.mrb[0].mxu0
        %978 = vdwg.mxu0
        %980 = vrot.lane.b32.xlu0 %v246, 112
        %v981 = vpop.permute.xlu0 %980
        %v983 = vsel %vm452, %v927, 0
        %v986 = vsel %vm496, %v981, 0
        %988 = vmatprep.subr.bf16.mxu0 0
        %989 = vmatpush1.bf16.msra.mxu0 %v986
        %990 = vmatprep.subr.bf16.mxu0 0
        %991 = vmatpush1.bf16.msra.mxu0 0
        %992 = vmatprep.subr.bf16.mxu0 0
        %993 = vmatpush1.bf16.msra.mxu0 0
        %994 = vmatprep.subr.bf16.mxu0 0
        %995 = vmatpush1.bf16.msra.mxu0 0
        %996 = vmatprep.subr.bf16.mxu0 0
        %997 = vmatpush1.bf16.msra.mxu0 0
        %998 = vmatprep.subr.bf16.mxu0 0
        %999 = vmatpush1.bf16.msra.mxu0 0
        %1000 = vmatprep.subr.bf16.mxu0 0
        %1001 = vmatpush1.bf16.msra.mxu0 0
        %1002 = vmatprep.subr.bf16.mxu0 0
        %1003 = vmatpush1.bf16.msra.mxu0 0
        %1004 = vmatprep.subr.bf16.mxu0 0
        %1005 = vmatpush1.bf16.msra.mxu0 0
        %1006 = vmatprep.subr.bf16.mxu0 0
        %1007 = vmatpush1.bf16.msra.mxu0 0
        %1008 = vmatprep.subr.bf16.mxu0 0
        %1009 = vmatpush1.bf16.msra.mxu0 0
        %1010 = vmatprep.subr.bf16.mxu0 0
        %1011 = vmatpush1.bf16.msra.mxu0 0
        %1012 = vmatprep.subr.bf16.mxu0 0
        %1013 = vmatpush1.bf16.msra.mxu0 0
        %1014 = vmatprep.subr.bf16.mxu0 0
        %1015 = vmatpush1.bf16.msra.mxu0 0
        %1016 = vmatprep.subr.bf16.mxu0 0
        %1017 = vmatpush1.bf16.msra.mxu0 0
        %1018 = vmatprep.subr.bf16.mxu0 0
        %1019 = vmatpush1.bf16.msra.mxu0 0
        %1020 = vmatprep.mubr.bf16.mxu0 0
        %1021 = vmatmul.mubr.bf16.gmra.mrb[0].mxu0 %v983
        %v1022 = vpop.f32.mrb[0].mxu0
        %v1023 = vadd.f32 0.0, %v1022
        %v1024 = vpop.f32.mrb[0].mxu0
        %v1025 = vpop.f32.mrb[0].mxu0
        %v1026 = vpop.f32.mrb[0].mxu0
        %1027 = vdwg.mxu0
        %1029 = vrot.lane.b32.xlu0 %v247, 112
        %v1030 = vpop.permute.xlu0 %1029
        %v1032 = vsel %vm452, %v928, 0
        %v1035 = vsel %vm496, %v1030, 0
        %1037 = vmatprep.subr.bf16.mxu0 0
        %1038 = vmatpush1.bf16.msra.mxu0 %v1035
        %1039 = vmatprep.subr.bf16.mxu0 0
        %1040 = vmatpush1.bf16.msra.mxu0 0
        %1041 = vmatprep.subr.bf16.mxu0 0
        %1042 = vmatpush1.bf16.msra.mxu0 0
        %1043 = vmatprep.subr.bf16.mxu0 0
        %1044 = vmatpush1.bf16.msra.mxu0 0
        %1045 = vmatprep.subr.bf16.mxu0 0
        %1046 = vmatpush1.bf16.msra.mxu0 0
        %1047 = vmatprep.subr.bf16.mxu0 0
        %1048 = vmatpush1.bf16.msra.mxu0 0
        %1049 = vmatprep.subr.bf16.mxu0 0
        %1050 = vmatpush1.bf16.msra.mxu0 0
        %1051 = vmatprep.subr.bf16.mxu0 0
        %1052 = vmatpush1.bf16.msra.mxu0 0
        %1053 = vmatprep.subr.bf16.mxu0 0
        %1054 = vmatpush1.bf16.msra.mxu0 0
        %1055 = vmatprep.subr.bf16.mxu0 0
        %1056 = vmatpush1.bf16.msra.mxu0 0
        %1057 = vmatprep.subr.bf16.mxu0 0
        %1058 = vmatpush1.bf16.msra.mxu0 0
        %1059 = vmatprep.subr.bf16.mxu0 0
        %1060 = vmatpush1.bf16.msra.mxu0 0
        %1061 = vmatprep.subr.bf16.mxu0 0
        %1062 = vmatpush1.bf16.msra.mxu0 0
        %1063 = vmatprep.subr.bf16.mxu0 0
        %1064 = vmatpush1.bf16.msra.mxu0 0
        %1065 = vmatprep.subr.bf16.mxu0 0
        %1066 = vmatpush1.bf16.msra.mxu0 0
        %1067 = vmatprep.subr.bf16.mxu0 0
        %1068 = vmatpush1.bf16.msra.mxu0 0
        %1069 = vmatprep.mubr.bf16.mxu0 0
        %1070 = vmatmul.mubr.bf16.gmra.mrb[0].mxu0 %v1032
        %v1071 = vpop.f32.mrb[0].mxu0
        %v1072 = vadd.f32 0.0, %v1071
        %v1073 = vpop.f32.mrb[0].mxu0
        %v1074 = vpop.f32.mrb[0].mxu0
        %v1075 = vpop.f32.mrb[0].mxu0
        %1076 = vdwg.mxu0
        %1078 = vrot.lane.b32.xlu0 %v248, 112
        %v1079 = vpop.permute.xlu0 %1078
        %v1081 = vsel %vm452, %v929, 0
        %v1084 = vsel %vm496, %v1079, 0
        %1086 = vmatprep.subr.bf16.mxu0 0
        %1087 = vmatpush1.bf16.msra.mxu0 %v1084
        %1088 = vmatprep.subr.bf16.mxu0 0
        %1089 = vmatpush1.bf16.msra.mxu0 0
        %1090 = vmatprep.subr.bf16.mxu0 0
        %1091 = vmatpush1.bf16.msra.mxu0 0
        %1092 = vmatprep.subr.bf16.mxu0 0
        %1093 = vmatpush1.bf16.msra.mxu0 0
        %1094 = vmatprep.subr.bf16.mxu0 0
        %1095 = vmatpush1.bf16.msra.mxu0 0
        %1096 = vmatprep.subr.bf16.mxu0 0
        %1097 = vmatpush1.bf16.msra.mxu0 0
        %1098 = vmatprep.subr.bf16.mxu0 0
        %1099 = vmatpush1.bf16.msra.mxu0 0
        %1100 = vmatprep.subr.bf16.mxu0 0
        %1101 = vmatpush1.bf16.msra.mxu0 0
        %1102 = vmatprep.subr.bf16.mxu0 0
        %1103 = vmatpush1.bf16.msra.mxu0 0
        %1104 = vmatprep.subr.bf16.mxu0 0
        %1105 = vmatpush1.bf16.msra.mxu0 0
        %1106 = vmatprep.subr.bf16.mxu0 0
        %1107 = vmatpush1.bf16.msra.mxu0 0
        %1108 = vmatprep.subr.bf16.mxu0 0
        %1109 = vmatpush1.bf16.msra.mxu0 0
        %1110 = vmatprep.subr.bf16.mxu0 0
        %1111 = vmatpush1.bf16.msra.mxu0 0
        %1112 = vmatprep.subr.bf16.mxu0 0
        %1113 = vmatpush1.bf16.msra.mxu0 0
        %1114 = vmatprep.subr.bf16.mxu0 0
        %1115 = vmatpush1.bf16.msra.mxu0 0
        %1116 = vmatprep.subr.bf16.mxu0 0
        %1117 = vmatpush1.bf16.msra.mxu0 0
        %1118 = vmatprep.mubr.bf16.mxu0 0
        %1119 = vmatmul.mubr.bf16.gmra.mrb[0].mxu0 %v1081
        %v1120 = vpop.f32.mrb[0].mxu0
        %v1121 = vadd.f32 0.0, %v1120
        %v1122 = vpop.f32.mrb[0].mxu0
        %v1123 = vpop.f32.mrb[0].mxu0
        %v1124 = vpop.f32.mrb[0].mxu0
        %1125 = vdwg.mxu0
        %v1126 = vrcp.pop %v916
        %v1127 = vrcp.pop %v919
        %v1128 = vrcp.pop %v922
        %v1129 = vrcp.pop %v925
        %v1130 = vmul.f32 %v974, %v1126
        %v1131 = vmul.f32 %v1023, %v1127
        %v1132 = vmul.f32 %v1072, %v1128
        %v1133 = vmul.f32 %v1121, %v1129
        %1134 = vrot.lane.b32.xlu0 %v241, 96
        %v1135 = vpop.permute.xlu0 %1134
        %1136 = vrot.lane.b32.xlu0 %v241, 32
        %v1137 = vpop.permute.xlu0 %1136
        %v1139 = vsel %vm252, %v1135, 0
        %v1142 = vsel %vm252, %v1137, 0
        %1144 = vmatprep.subr.bf16.mxu0 0
        %1145 = vmatpush1.bf16.xpose.msra.mxu0 %v1142
        %1146 = vmatprep.subr.bf16.mxu0 0
        %1147 = vmatpush1.bf16.xpose.msra.mxu0 0
        %1148 = vmatprep.subr.bf16.mxu0 0
        %1149 = vmatpush1.bf16.xpose.msra.mxu0 0
        %1150 = vmatprep.subr.bf16.mxu0 0
        %1151 = vmatpush1.bf16.xpose.msra.mxu0 0
        %1152 = vmatprep.subr.bf16.mxu0 0
        %1153 = vmatpush1.bf16.xpose.msra.mxu0 0
        %1154 = vmatprep.subr.bf16.mxu0 0
        %1155 = vmatpush1.bf16.xpose.msra.mxu0 0
        %1156 = vmatprep.subr.bf16.mxu0 0
        %1157 = vmatpush1.bf16.xpose.msra.mxu0 0
        %1158 = vmatprep.subr.bf16.mxu0 0
        %1159 = vmatpush1.bf16.xpose.msra.mxu0 0
        %1160 = vmatprep.subr.bf16.mxu0 0
        %1161 = vmatpush1.bf16.xpose.msra.mxu0 0
        %1162 = vmatprep.subr.bf16.mxu0 0
        %1163 = vmatpush1.bf16.xpose.msra.mxu0 0
        %1164 = vmatprep.subr.bf16.mxu0 0
        %1165 = vmatpush1.bf16.xpose.msra.mxu0 0
        %1166 = vmatprep.subr.bf16.mxu0 0
        %1167 = vmatpush1.bf16.xpose.msra.mxu0 0
        %1168 = vmatprep.subr.bf16.mxu0 0
        %1169 = vmatpush1.bf16.xpose.msra.mxu0 0
        %1170 = vmatprep.subr.bf16.mxu0 0
        %1171 = vmatpush1.bf16.xpose.msra.mxu0 0
        %1172 = vmatprep.subr.bf16.mxu0 0
        %1173 = vmatpush1.bf16.xpose.msra.mxu0 0
        %1174 = vmatprep.subr.bf16.mxu0 0
        %1175 = vmatpush1.bf16.xpose.msra.mxu0 0
        %1176 = vmatprep.mubr.bf16.mxu0 0
        %1177 = vmatmul.mubr.bf16.gmra.mrb[0].mxu0 %v1139
        %v1178 = vpop.f32.mrb[0].mxu0
        %v1179 = vadd.f32 0.0, %v1178
        %v1180 = vpop.f32.mrb[0].mxu0
        %v1181 = vpop.f32.mrb[0].mxu0
        %v1182 = vpop.f32.mrb[0].mxu0
        %1183 = vdwg.mxu0
        %1184 = vrot.lane.b32.xlu0 %v242, 96
        %v1185 = vpop.permute.xlu0 %1184
        %1186 = vrot.lane.b32.xlu0 %v242, 32
        %v1187 = vpop.permute.xlu0 %1186
        %v1189 = vsel %vm252, %v1185, 0
        %v1192 = vsel %vm252, %v1187, 0
        %1194 = vmatprep.subr.bf16.mxu0 0
        %1195 = vmatpush1.bf16.xpose.msra.mxu0 %v1192
        %1196 = vmatprep.subr.bf16.mxu0 0
        %1197 = vmatpush1.bf16.xpose.msra.mxu0 0
        %1198 = vmatprep.subr.bf16.mxu0 0
        %1199 = vmatpush1.bf16.xpose.msra.mxu0 0
        %1200 = vmatprep.subr.bf16.mxu0 0
        %1201 = vmatpush1.bf16.xpose.msra.mxu0 0
        %1202 = vmatprep.subr.bf16.mxu0 0
        %1203 = vmatpush1.bf16.xpose.msra.mxu0 0
        %1204 = vmatprep.subr.bf16.mxu0 0
        %1205 = vmatpush1.bf16.xpose.msra.mxu0 0
        %1206 = vmatprep.subr.bf16.mxu0 0
        %1207 = vmatpush1.bf16.xpose.msra.mxu0 0
        %1208 = vmatprep.subr.bf16.mxu0 0
        %1209 = vmatpush1.bf16.xpose.msra.mxu0 0
        %1210 = vmatprep.subr.bf16.mxu0 0
        %1211 = vmatpush1.bf16.xpose.msra.mxu0 0
        %1212 = vmatprep.subr.bf16.mxu0 0
        %1213 = vmatpush1.bf16.xpose.msra.mxu0 0
        %1214 = vmatprep.subr.bf16.mxu0 0
        %1215 = vmatpush1.bf16.xpose.msra.mxu0 0
        %1216 = vmatprep.subr.bf16.mxu0 0
        %1217 = vmatpush1.bf16.xpose.msra.mxu0 0
        %1218 = vmatprep.subr.bf16.mxu0 0
        %1219 = vmatpush1.bf16.xpose.msra.mxu0 0
        %1220 = vmatprep.subr.bf16.mxu0 0
        %1221 = vmatpush1.bf16.xpose.msra.mxu0 0
        %1222 = vmatprep.subr.bf16.mxu0 0
        %1223 = vmatpush1.bf16.xpose.msra.mxu0 0
        %1224 = vmatprep.subr.bf16.mxu0 0
        %1225 = vmatpush1.bf16.xpose.msra.mxu0 0
        %1226 = vmatprep.mubr.bf16.mxu0 0
        %1227 = vmatmul.mubr.bf16.gmra.mrb[0].mxu0 %v1189
        %v1228 = vpop.f32.mrb[0].mxu0
        %v1229 = vadd.f32 0.0, %v1228
        %v1230 = vpop.f32.mrb[0].mxu0
        %v1231 = vpop.f32.mrb[0].mxu0
        %v1232 = vpop.f32.mrb[0].mxu0
        %1233 = vdwg.mxu0
        %1234 = vrot.lane.b32.xlu0 %v243, 96
        %v1235 = vpop.permute.xlu0 %1234
        %1236 = vrot.lane.b32.xlu0 %v243, 32
        %v1237 = vpop.permute.xlu0 %1236
        %v1239 = vsel %vm252, %v1235, 0
        %v1242 = vsel %vm252, %v1237, 0
        %1244 = vmatprep.subr.bf16.mxu0 0
        %1245 = vmatpush1.bf16.xpose.msra.mxu0 %v1242
        %1246 = vmatprep.subr.bf16.mxu0 0
        %1247 = vmatpush1.bf16.xpose.msra.mxu0 0
        %1248 = vmatprep.subr.bf16.mxu0 0
        %1249 = vmatpush1.bf16.xpose.msra.mxu0 0
        %1250 = vmatprep.subr.bf16.mxu0 0
        %1251 = vmatpush1.bf16.xpose.msra.mxu0 0
        %1252 = vmatprep.subr.bf16.mxu0 0
        %1253 = vmatpush1.bf16.xpose.msra.mxu0 0
        %1254 = vmatprep.subr.bf16.mxu0 0
        %1255 = vmatpush1.bf16.xpose.msra.mxu0 0
        %1256 = vmatprep.subr.bf16.mxu0 0
        %1257 = vmatpush1.bf16.xpose.msra.mxu0 0
        %1258 = vmatprep.subr.bf16.mxu0 0
        %1259 = vmatpush1.bf16.xpose.msra.mxu0 0
        %1260 = vmatprep.subr.bf16.mxu0 0
        %1261 = vmatpush1.bf16.xpose.msra.mxu0 0
        %1262 = vmatprep.subr.bf16.mxu0 0
        %1263 = vmatpush1.bf16.xpose.msra.mxu0 0
        %1264 = vmatprep.subr.bf16.mxu0 0
        %1265 = vmatpush1.bf16.xpose.msra.mxu0 0
        %1266 = vmatprep.subr.bf16.mxu0 0
        %1267 = vmatpush1.bf16.xpose.msra.mxu0 0
        %1268 = vmatprep.subr.bf16.mxu0 0
        %1269 = vmatpush1.bf16.xpose.msra.mxu0 0
        %1270 = vmatprep.subr.bf16.mxu0 0
        %1271 = vmatpush1.bf16.xpose.msra.mxu0 0
        %1272 = vmatprep.subr.bf16.mxu0 0
        %1273 = vmatpush1.bf16.xpose.msra.mxu0 0
        %1274 = vmatprep.subr.bf16.mxu0 0
        %1275 = vmatpush1.bf16.xpose.msra.mxu0 0
        %1276 = vmatprep.mubr.bf16.mxu0 0
        %1277 = vmatmul.mubr.bf16.gmra.mrb[0].mxu0 %v1239
        %v1278 = vpop.f32.mrb[0].mxu0
        %v1279 = vadd.f32 0.0, %v1278
        %v1280 = vpop.f32.mrb[0].mxu0
        %v1281 = vpop.f32.mrb[0].mxu0
        %v1282 = vpop.f32.mrb[0].mxu0
        %1283 = vdwg.mxu0
        %1284 = vrot.lane.b32.xlu0 %v244, 96
        %v1285 = vpop.permute.xlu0 %1284
        %1286 = vrot.lane.b32.xlu0 %v244, 32
        %v1287 = vpop.permute.xlu0 %1286
        %v1289 = vsel %vm252, %v1285, 0
        %v1292 = vsel %vm252, %v1287, 0
        %1294 = vmatprep.subr.bf16.mxu0 0
        %1295 = vmatpush1.bf16.xpose.msra.mxu0 %v1292
        %1296 = vmatprep.subr.bf16.mxu0 0
        %1297 = vmatpush1.bf16.xpose.msra.mxu0 0
        %1298 = vmatprep.subr.bf16.mxu0 0
        %1299 = vmatpush1.bf16.xpose.msra.mxu0 0
        %1300 = vmatprep.subr.bf16.mxu0 0
        %1301 = vmatpush1.bf16.xpose.msra.mxu0 0
        %1302 = vmatprep.subr.bf16.mxu0 0
        %1303 = vmatpush1.bf16.xpose.msra.mxu0 0
        %1304 = vmatprep.subr.bf16.mxu0 0
        %1305 = vmatpush1.bf16.xpose.msra.mxu0 0
        %1306 = vmatprep.subr.bf16.mxu0 0
        %1307 = vmatpush1.bf16.xpose.msra.mxu0 0
        %1308 = vmatprep.subr.bf16.mxu0 0
        %1309 = vmatpush1.bf16.xpose.msra.mxu0 0
        %1310 = vmatprep.subr.bf16.mxu0 0
        %1311 = vmatpush1.bf16.xpose.msra.mxu0 0
        %1312 = vmatprep.subr.bf16.mxu0 0
        %1313 = vmatpush1.bf16.xpose.msra.mxu0 0
        %1314 = vmatprep.subr.bf16.mxu0 0
        %1315 = vmatpush1.bf16.xpose.msra.mxu0 0
        %1316 = vmatprep.subr.bf16.mxu0 0
        %1317 = vmatpush1.bf16.xpose.msra.mxu0 0
        %1318 = vmatprep.subr.bf16.mxu0 0
        %1319 = vmatpush1.bf16.xpose.msra.mxu0 0
        %1320 = vmatprep.subr.bf16.mxu0 0
        %1321 = vmatpush1.bf16.xpose.msra.mxu0 0
        %1322 = vmatprep.subr.bf16.mxu0 0
        %1323 = vmatpush1.bf16.xpose.msra.mxu0 0
        %1324 = vmatprep.subr.bf16.mxu0 0
        %1325 = vmatpush1.bf16.xpose.msra.mxu0 0
        %1326 = vmatprep.mubr.bf16.mxu0 0
        %1327 = vmatmul.mubr.bf16.gmra.mrb[0].mxu0 %v1289
        %v1328 = vpop.f32.mrb[0].mxu0
        %v1329 = vadd.f32 0.0, %v1328
        %v1330 = vpop.f32.mrb[0].mxu0
        %v1331 = vpop.f32.mrb[0].mxu0
        %v1332 = vpop.f32.mrb[0].mxu0
        %1333 = vdwg.mxu0
        %v1334 = vsel %vm447, -inf, %v1179
        %v1335 = vsel %vm447, -inf, %v1229
        %v1336 = vsel %vm447, -inf, %v1279
        %v1337 = vsel %vm447, -inf, %v1329
        %v1338 = vsel %vm452, %v1334, -inf
        %1339 = vmax.xlane.f32.xlu0 %v1338
        %v1340 = vpop.xlane.xlu0 %1339
        %v1341 = vsel %vm452, %v1335, -inf
        %1342 = vmax.xlane.f32.xlu0 %v1341
        %v1343 = vpop.xlane.xlu0 %1342
        %v1344 = vsel %vm452, %v1336, -inf
        %1345 = vmax.xlane.f32.xlu0 %v1344
        %v1346 = vpop.xlane.xlu0 %1345
        %v1347 = vsel %vm452, %v1337, -inf
        %1348 = vmax.xlane.f32.xlu0 %v1347
        %v1349 = vpop.xlane.xlu0 %1348
        %v1350 = vsub.f32 %v1334, %v1340
        %v1351 = vsub.f32 %v1335, %v1343
        %v1352 = vsub.f32 %v1336, %v1346
        %v1353 = vsub.f32 %v1337, %v1349
        %v1354 = vmul.f32 %v1350, 1.442695
        %v1355 = vpow.pop %v1354
        %v1356 = vmul.f32 %v1351, 1.442695
        %v1357 = vpow.pop %v1356
        %v1358 = vmul.f32 %v1352, 1.442695
        %v1359 = vpow.pop %v1358
        %v1360 = vmul.f32 %v1353, 1.442695
        %v1361 = vpow.pop %v1360
        %v1362 = vsel %vm452, %v1355, 0.0
        %1363 = vadd.xlane.f32.xlu0 %v1362
        %v1364 = vpop.xlane.xlu0 %1363
        %v1365 = vsel %vm452, %v1357, 0.0
        %1366 = vadd.xlane.f32.xlu0 %v1365
        %v1367 = vpop.xlane.xlu0 %1366
        %v1368 = vsel %vm452, %v1359, 0.0
        %1369 = vadd.xlane.f32.xlu0 %v1368
        %v1370 = vpop.xlane.xlu0 %1369
        %v1371 = vsel %vm452, %v1361, 0.0
        %1372 = vadd.xlane.f32.xlu0 %v1371
        %v1373 = vpop.xlane.xlu0 %1372
        %v1374 = vpack.c.bf16 %v1355, %v1355
        %v1375 = vpack.c.bf16 %v1357, %v1357
        %v1376 = vpack.c.bf16 %v1359, %v1359
        %v1377 = vpack.c.bf16 %v1361, %v1361
        %1378 = vrot.lane.b32.xlu0 %v245, 96
        %v1379 = vpop.permute.xlu0 %1378
        %v1381 = vsel %vm452, %v1374, 0
        %v1384 = vsel %vm496, %v1379, 0
        %1386 = vmatprep.subr.bf16.mxu0 0
        %1387 = vmatpush1.bf16.msra.mxu0 %v1384
        %1388 = vmatprep.subr.bf16.mxu0 0
        %1389 = vmatpush1.bf16.msra.mxu0 0
        %1390 = vmatprep.subr.bf16.mxu0 0
        %1391 = vmatpush1.bf16.msra.mxu0 0
        %1392 = vmatprep.subr.bf16.mxu0 0
        %1393 = vmatpush1.bf16.msra.mxu0 0
        %1394 = vmatprep.subr.bf16.mxu0 0
        %1395 = vmatpush1.bf16.msra.mxu0 0
        %1396 = vmatprep.subr.bf16.mxu0 0
        %1397 = vmatpush1.bf16.msra.mxu0 0
        %1398 = vmatprep.subr.bf16.mxu0 0
        %1399 = vmatpush1.bf16.msra.mxu0 0
        %1400 = vmatprep.subr.bf16.mxu0 0
        %1401 = vmatpush1.bf16.msra.mxu0 0
        %1402 = vmatprep.subr.bf16.mxu0 0
        %1403 = vmatpush1.bf16.msra.mxu0 0
        %1404 = vmatprep.subr.bf16.mxu0 0
        %1405 = vmatpush1.bf16.msra.mxu0 0
        %1406 = vmatprep.subr.bf16.mxu0 0
        %1407 = vmatpush1.bf16.msra.mxu0 0
        %1408 = vmatprep.subr.bf16.mxu0 0
        %1409 = vmatpush1.bf16.msra.mxu0 0
        %1410 = vmatprep.subr.bf16.mxu0 0
        %1411 = vmatpush1.bf16.msra.mxu0 0
        %1412 = vmatprep.subr.bf16.mxu0 0
        %1413 = vmatpush1.bf16.msra.mxu0 0
        %1414 = vmatprep.subr.bf16.mxu0 0
        %1415 = vmatpush1.bf16.msra.mxu0 0
        %1416 = vmatprep.subr.bf16.mxu0 0
        %1417 = vmatpush1.bf16.msra.mxu0 0
        %1418 = vmatprep.mubr.bf16.mxu0 0
        %1419 = vmatmul.mubr.bf16.gmra.mrb[0].mxu0 %v1381
        %v1420 = vpop.f32.mrb[0].mxu0
        %v1421 = vadd.f32 0.0, %v1420
        %v1422 = vpop.f32.mrb[0].mxu0
        %v1423 = vpop.f32.mrb[0].mxu0
        %v1424 = vpop.f32.mrb[0].mxu0
        %1425 = vdwg.mxu0
        %1426 = vrot.lane.b32.xlu0 %v246, 96
        %v1427 = vpop.permute.xlu0 %1426
        %v1429 = vsel %vm452, %v1375, 0
        %v1432 = vsel %vm496, %v1427, 0
        %1434 = vmatprep.subr.bf16.mxu0 0
        %1435 = vmatpush1.bf16.msra.mxu0 %v1432
        %1436 = vmatprep.subr.bf16.mxu0 0
        %1437 = vmatpush1.bf16.msra.mxu0 0
        %1438 = vmatprep.subr.bf16.mxu0 0
        %1439 = vmatpush1.bf16.msra.mxu0 0
        %1440 = vmatprep.subr.bf16.mxu0 0
        %1441 = vmatpush1.bf16.msra.mxu0 0
        %1442 = vmatprep.subr.bf16.mxu0 0
        %1443 = vmatpush1.bf16.msra.mxu0 0
        %1444 = vmatprep.subr.bf16.mxu0 0
        %1445 = vmatpush1.bf16.msra.mxu0 0
        %1446 = vmatprep.subr.bf16.mxu0 0
        %1447 = vmatpush1.bf16.msra.mxu0 0
        %1448 = vmatprep.subr.bf16.mxu0 0
        %1449 = vmatpush1.bf16.msra.mxu0 0
        %1450 = vmatprep.subr.bf16.mxu0 0
        %1451 = vmatpush1.bf16.msra.mxu0 0
        %1452 = vmatprep.subr.bf16.mxu0 0
        %1453 = vmatpush1.bf16.msra.mxu0 0
        %1454 = vmatprep.subr.bf16.mxu0 0
        %1455 = vmatpush1.bf16.msra.mxu0 0
        %1456 = vmatprep.subr.bf16.mxu0 0
        %1457 = vmatpush1.bf16.msra.mxu0 0
        %1458 = vmatprep.subr.bf16.mxu0 0
        %1459 = vmatpush1.bf16.msra.mxu0 0
        %1460 = vmatprep.subr.bf16.mxu0 0
        %1461 = vmatpush1.bf16.msra.mxu0 0
        %1462 = vmatprep.subr.bf16.mxu0 0
        %1463 = vmatpush1.bf16.msra.mxu0 0
        %1464 = vmatprep.subr.bf16.mxu0 0
        %1465 = vmatpush1.bf16.msra.mxu0 0
        %1466 = vmatprep.mubr.bf16.mxu0 0
        %1467 = vmatmul.mubr.bf16.gmra.mrb[0].mxu0 %v1429
        %v1468 = vpop.f32.mrb[0].mxu0
        %v1469 = vadd.f32 0.0, %v1468
        %v1470 = vpop.f32.mrb[0].mxu0
        %v1471 = vpop.f32.mrb[0].mxu0
        %v1472 = vpop.f32.mrb[0].mxu0
        %1473 = vdwg.mxu0
        %1474 = vrot.lane.b32.xlu0 %v247, 96
        %v1475 = vpop.permute.xlu0 %1474
        %v1477 = vsel %vm452, %v1376, 0
        %v1480 = vsel %vm496, %v1475, 0
        %1482 = vmatprep.subr.bf16.mxu0 0
        %1483 = vmatpush1.bf16.msra.mxu0 %v1480
        %1484 = vmatprep.subr.bf16.mxu0 0
        %1485 = vmatpush1.bf16.msra.mxu0 0
        %1486 = vmatprep.subr.bf16.mxu0 0
        %1487 = vmatpush1.bf16.msra.mxu0 0
        %1488 = vmatprep.subr.bf16.mxu0 0
        %1489 = vmatpush1.bf16.msra.mxu0 0
        %1490 = vmatprep.subr.bf16.mxu0 0
        %1491 = vmatpush1.bf16.msra.mxu0 0
        %1492 = vmatprep.subr.bf16.mxu0 0
        %1493 = vmatpush1.bf16.msra.mxu0 0
        %1494 = vmatprep.subr.bf16.mxu0 0
        %1495 = vmatpush1.bf16.msra.mxu0 0
        %1496 = vmatprep.subr.bf16.mxu0 0
        %1497 = vmatpush1.bf16.msra.mxu0 0
        %1498 = vmatprep.subr.bf16.mxu0 0
        %1499 = vmatpush1.bf16.msra.mxu0 0
        %1500 = vmatprep.subr.bf16.mxu0 0
        %1501 = vmatpush1.bf16.msra.mxu0 0
        %1502 = vmatprep.subr.bf16.mxu0 0
        %1503 = vmatpush1.bf16.msra.mxu0 0
        %1504 = vmatprep.subr.bf16.mxu0 0
        %1505 = vmatpush1.bf16.msra.mxu0 0
        %1506 = vmatprep.subr.bf16.mxu0 0
        %1507 = vmatpush1.bf16.msra.mxu0 0
        %1508 = vmatprep.subr.bf16.mxu0 0
        %1509 = vmatpush1.bf16.msra.mxu0 0
        %1510 = vmatprep.subr.bf16.mxu0 0
        %1511 = vmatpush1.bf16.msra.mxu0 0
        %1512 = vmatprep.subr.bf16.mxu0 0
        %1513 = vmatpush1.bf16.msra.mxu0 0
        %1514 = vmatprep.mubr.bf16.mxu0 0
        %1515 = vmatmul.mubr.bf16.gmra.mrb[0].mxu0 %v1477
        %v1516 = vpop.f32.mrb[0].mxu0
        %v1517 = vadd.f32 0.0, %v1516
        %v1518 = vpop.f32.mrb[0].mxu0
        %v1519 = vpop.f32.mrb[0].mxu0
        %v1520 = vpop.f32.mrb[0].mxu0
        %1521 = vdwg.mxu0
        %1522 = vrot.lane.b32.xlu0 %v248, 96
        %v1523 = vpop.permute.xlu0 %1522
        %v1525 = vsel %vm452, %v1377, 0
        %v1528 = vsel %vm496, %v1523, 0
        %1530 = vmatprep.subr.bf16.mxu0 0
        %1531 = vmatpush1.bf16.msra.mxu0 %v1528
        %1532 = vmatprep.subr.bf16.mxu0 0
        %1533 = vmatpush1.bf16.msra.mxu0 0
        %1534 = vmatprep.subr.bf16.mxu0 0
        %1535 = vmatpush1.bf16.msra.mxu0 0
        %1536 = vmatprep.subr.bf16.mxu0 0
        %1537 = vmatpush1.bf16.msra.mxu0 0
        %1538 = vmatprep.subr.bf16.mxu0 0
        %1539 = vmatpush1.bf16.msra.mxu0 0
        %1540 = vmatprep.subr.bf16.mxu0 0
        %1541 = vmatpush1.bf16.msra.mxu0 0
        %1542 = vmatprep.subr.bf16.mxu0 0
        %1543 = vmatpush1.bf16.msra.mxu0 0
        %1544 = vmatprep.subr.bf16.mxu0 0
        %1545 = vmatpush1.bf16.msra.mxu0 0
        %1546 = vmatprep.subr.bf16.mxu0 0
        %1547 = vmatpush1.bf16.msra.mxu0 0
        %1548 = vmatprep.subr.bf16.mxu0 0
        %1549 = vmatpush1.bf16.msra.mxu0 0
        %1550 = vmatprep.subr.bf16.mxu0 0
        %1551 = vmatpush1.bf16.msra.mxu0 0
        %1552 = vmatprep.subr.bf16.mxu0 0
        %1553 = vmatpush1.bf16.msra.mxu0 0
        %1554 = vmatprep.subr.bf16.mxu0 0
        %1555 = vmatpush1.bf16.msra.mxu0 0
        %1556 = vmatprep.subr.bf16.mxu0 0
        %1557 = vmatpush1.bf16.msra.mxu0 0
        %1558 = vmatprep.subr.bf16.mxu0 0
        %1559 = vmatpush1.bf16.msra.mxu0 0
        %1560 = vmatprep.subr.bf16.mxu0 0
        %1561 = vmatpush1.bf16.msra.mxu0 0
        %1562 = vmatprep.mubr.bf16.mxu0 0
        %1563 = vmatmul.mubr.bf16.gmra.mrb[0].mxu0 %v1525
        %v1564 = vpop.f32.mrb[0].mxu0
        %v1565 = vadd.f32 0.0, %v1564
        %v1566 = vpop.f32.mrb[0].mxu0
        %v1567 = vpop.f32.mrb[0].mxu0
        %v1568 = vpop.f32.mrb[0].mxu0
        %1569 = vdwg.mxu0
        %v1570 = vrcp.pop %v1364
        %v1571 = vrcp.pop %v1367
        %v1572 = vrcp.pop %v1370
        %v1573 = vrcp.pop %v1373
        %v1574 = vmul.f32 %v1421, %v1570
        %v1575 = vmul.f32 %v1469, %v1571
        %v1576 = vmul.f32 %v1517, %v1572
        %v1577 = vmul.f32 %v1565, %v1573
        %1578 = vrot.lane.b32.xlu0 %v241, 80
        %v1579 = vpop.permute.xlu0 %1578
        %1580 = vrot.lane.b32.xlu0 %v241, 16
        %v1581 = vpop.permute.xlu0 %1580
        %v1583 = vsel %vm252, %v1579, 0
        %v1586 = vsel %vm252, %v1581, 0
        %1588 = vmatprep.subr.bf16.mxu0 0
        %1589 = vmatpush1.bf16.xpose.msra.mxu0 %v1586
        %1590 = vmatprep.subr.bf16.mxu0 0
        %1591 = vmatpush1.bf16.xpose.msra.mxu0 0
        %1592 = vmatprep.subr.bf16.mxu0 0
        %1593 = vmatpush1.bf16.xpose.msra.mxu0 0
        %1594 = vmatprep.subr.bf16.mxu0 0
        %1595 = vmatpush1.bf16.xpose.msra.mxu0 0
        %1596 = vmatprep.subr.bf16.mxu0 0
        %1597 = vmatpush1.bf16.xpose.msra.mxu0 0
        %1598 = vmatprep.subr.bf16.mxu0 0
        %1599 = vmatpush1.bf16.xpose.msra.mxu0 0
        %1600 = vmatprep.subr.bf16.mxu0 0
        %1601 = vmatpush1.bf16.xpose.msra.mxu0 0
        %1602 = vmatprep.subr.bf16.mxu0 0
        %1603 = vmatpush1.bf16.xpose.msra.mxu0 0
        %1604 = vmatprep.subr.bf16.mxu0 0
        %1605 = vmatpush1.bf16.xpose.msra.mxu0 0
        %1606 = vmatprep.subr.bf16.mxu0 0
        %1607 = vmatpush1.bf16.xpose.msra.mxu0 0
        %1608 = vmatprep.subr.bf16.mxu0 0
        %1609 = vmatpush1.bf16.xpose.msra.mxu0 0
        %1610 = vmatprep.subr.bf16.mxu0 0
        %1611 = vmatpush1.bf16.xpose.msra.mxu0 0
        %1612 = vmatprep.subr.bf16.mxu0 0
        %1613 = vmatpush1.bf16.xpose.msra.mxu0 0
        %1614 = vmatprep.subr.bf16.mxu0 0
        %1615 = vmatpush1.bf16.xpose.msra.mxu0 0
        %1616 = vmatprep.subr.bf16.mxu0 0
        %1617 = vmatpush1.bf16.xpose.msra.mxu0 0
        %1618 = vmatprep.subr.bf16.mxu0 0
        %1619 = vmatpush1.bf16.xpose.msra.mxu0 0
        %1620 = vmatprep.mubr.bf16.mxu0 0
        %1621 = vmatmul.mubr.bf16.gmra.mrb[0].mxu0 %v1583
        %v1622 = vpop.f32.mrb[0].mxu0
        %v1623 = vadd.f32 0.0, %v1622
        %v1624 = vpop.f32.mrb[0].mxu0
        %v1625 = vpop.f32.mrb[0].mxu0
        %v1626 = vpop.f32.mrb[0].mxu0
        %1627 = vdwg.mxu0
        %1628 = vrot.lane.b32.xlu0 %v242, 80
        %v1629 = vpop.permute.xlu0 %1628
        %1630 = vrot.lane.b32.xlu0 %v242, 16
        %v1631 = vpop.permute.xlu0 %1630
        %v1633 = vsel %vm252, %v1629, 0
        %v1636 = vsel %vm252, %v1631, 0
        %1638 = vmatprep.subr.bf16.mxu0 0
        %1639 = vmatpush1.bf16.xpose.msra.mxu0 %v1636
        %1640 = vmatprep.subr.bf16.mxu0 0
        %1641 = vmatpush1.bf16.xpose.msra.mxu0 0
        %1642 = vmatprep.subr.bf16.mxu0 0
        %1643 = vmatpush1.bf16.xpose.msra.mxu0 0
        %1644 = vmatprep.subr.bf16.mxu0 0
        %1645 = vmatpush1.bf16.xpose.msra.mxu0 0
        %1646 = vmatprep.subr.bf16.mxu0 0
        %1647 = vmatpush1.bf16.xpose.msra.mxu0 0
        %1648 = vmatprep.subr.bf16.mxu0 0
        %1649 = vmatpush1.bf16.xpose.msra.mxu0 0
        %1650 = vmatprep.subr.bf16.mxu0 0
        %1651 = vmatpush1.bf16.xpose.msra.mxu0 0
        %1652 = vmatprep.subr.bf16.mxu0 0
        %1653 = vmatpush1.bf16.xpose.msra.mxu0 0
        %1654 = vmatprep.subr.bf16.mxu0 0
        %1655 = vmatpush1.bf16.xpose.msra.mxu0 0
        %1656 = vmatprep.subr.bf16.mxu0 0
        %1657 = vmatpush1.bf16.xpose.msra.mxu0 0
        %1658 = vmatprep.subr.bf16.mxu0 0
        %1659 = vmatpush1.bf16.xpose.msra.mxu0 0
        %1660 = vmatprep.subr.bf16.mxu0 0
        %1661 = vmatpush1.bf16.xpose.msra.mxu0 0
        %1662 = vmatprep.subr.bf16.mxu0 0
        %1663 = vmatpush1.bf16.xpose.msra.mxu0 0
        %1664 = vmatprep.subr.bf16.mxu0 0
        %1665 = vmatpush1.bf16.xpose.msra.mxu0 0
        %1666 = vmatprep.subr.bf16.mxu0 0
        %1667 = vmatpush1.bf16.xpose.msra.mxu0 0
        %1668 = vmatprep.subr.bf16.mxu0 0
        %1669 = vmatpush1.bf16.xpose.msra.mxu0 0
        %1670 = vmatprep.mubr.bf16.mxu0 0
        %1671 = vmatmul.mubr.bf16.gmra.mrb[0].mxu0 %v1633
        %v1672 = vpop.f32.mrb[0].mxu0
        %v1673 = vadd.f32 0.0, %v1672
        %v1674 = vpop.f32.mrb[0].mxu0
        %v1675 = vpop.f32.mrb[0].mxu0
        %v1676 = vpop.f32.mrb[0].mxu0
        %1677 = vdwg.mxu0
        %1678 = vrot.lane.b32.xlu0 %v243, 80
        %v1679 = vpop.permute.xlu0 %1678
        %1680 = vrot.lane.b32.xlu0 %v243, 16
        %v1681 = vpop.permute.xlu0 %1680
        %v1683 = vsel %vm252, %v1679, 0
        %v1686 = vsel %vm252, %v1681, 0
        %1688 = vmatprep.subr.bf16.mxu0 0
        %1689 = vmatpush1.bf16.xpose.msra.mxu0 %v1686
        %1690 = vmatprep.subr.bf16.mxu0 0
        %1691 = vmatpush1.bf16.xpose.msra.mxu0 0
        %1692 = vmatprep.subr.bf16.mxu0 0
        %1693 = vmatpush1.bf16.xpose.msra.mxu0 0
        %1694 = vmatprep.subr.bf16.mxu0 0
        %1695 = vmatpush1.bf16.xpose.msra.mxu0 0
        %1696 = vmatprep.subr.bf16.mxu0 0
        %1697 = vmatpush1.bf16.xpose.msra.mxu0 0
        %1698 = vmatprep.subr.bf16.mxu0 0
        %1699 = vmatpush1.bf16.xpose.msra.mxu0 0
        %1700 = vmatprep.subr.bf16.mxu0 0
        %1701 = vmatpush1.bf16.xpose.msra.mxu0 0
        %1702 = vmatprep.subr.bf16.mxu0 0
        %1703 = vmatpush1.bf16.xpose.msra.mxu0 0
        %1704 = vmatprep.subr.bf16.mxu0 0
        %1705 = vmatpush1.bf16.xpose.msra.mxu0 0
        %1706 = vmatprep.subr.bf16.mxu0 0
        %1707 = vmatpush1.bf16.xpose.msra.mxu0 0
        %1708 = vmatprep.subr.bf16.mxu0 0
        %1709 = vmatpush1.bf16.xpose.msra.mxu0 0
        %1710 = vmatprep.subr.bf16.mxu0 0
        %1711 = vmatpush1.bf16.xpose.msra.mxu0 0
        %1712 = vmatprep.subr.bf16.mxu0 0
        %1713 = vmatpush1.bf16.xpose.msra.mxu0 0
        %1714 = vmatprep.subr.bf16.mxu0 0
        %1715 = vmatpush1.bf16.xpose.msra.mxu0 0
        %1716 = vmatprep.subr.bf16.mxu0 0
        %1717 = vmatpush1.bf16.xpose.msra.mxu0 0
        %1718 = vmatprep.subr.bf16.mxu0 0
        %1719 = vmatpush1.bf16.xpose.msra.mxu0 0
        %1720 = vmatprep.mubr.bf16.mxu0 0
        %1721 = vmatmul.mubr.bf16.gmra.mrb[0].mxu0 %v1683
        %v1722 = vpop.f32.mrb[0].mxu0
        %v1723 = vadd.f32 0.0, %v1722
        %v1724 = vpop.f32.mrb[0].mxu0
        %v1725 = vpop.f32.mrb[0].mxu0
        %v1726 = vpop.f32.mrb[0].mxu0
        %1727 = vdwg.mxu0
        %1728 = vrot.lane.b32.xlu0 %v244, 80
        %v1729 = vpop.permute.xlu0 %1728
        %1730 = vrot.lane.b32.xlu0 %v244, 16
        %v1731 = vpop.permute.xlu0 %1730
        %v1733 = vsel %vm252, %v1729, 0
        %v1736 = vsel %vm252, %v1731, 0
        %1738 = vmatprep.subr.bf16.mxu0 0
        %1739 = vmatpush1.bf16.xpose.msra.mxu0 %v1736
        %1740 = vmatprep.subr.bf16.mxu0 0
        %1741 = vmatpush1.bf16.xpose.msra.mxu0 0
        %1742 = vmatprep.subr.bf16.mxu0 0
        %1743 = vmatpush1.bf16.xpose.msra.mxu0 0
        %1744 = vmatprep.subr.bf16.mxu0 0
        %1745 = vmatpush1.bf16.xpose.msra.mxu0 0
        %1746 = vmatprep.subr.bf16.mxu0 0
        %1747 = vmatpush1.bf16.xpose.msra.mxu0 0
        %1748 = vmatprep.subr.bf16.mxu0 0
        %1749 = vmatpush1.bf16.xpose.msra.mxu0 0
        %1750 = vmatprep.subr.bf16.mxu0 0
        %1751 = vmatpush1.bf16.xpose.msra.mxu0 0
        %1752 = vmatprep.subr.bf16.mxu0 0
        %1753 = vmatpush1.bf16.xpose.msra.mxu0 0
        %1754 = vmatprep.subr.bf16.mxu0 0
        %1755 = vmatpush1.bf16.xpose.msra.mxu0 0
        %1756 = vmatprep.subr.bf16.mxu0 0
        %1757 = vmatpush1.bf16.xpose.msra.mxu0 0
        %1758 = vmatprep.subr.bf16.mxu0 0
        %1759 = vmatpush1.bf16.xpose.msra.mxu0 0
        %1760 = vmatprep.subr.bf16.mxu0 0
        %1761 = vmatpush1.bf16.xpose.msra.mxu0 0
        %1762 = vmatprep.subr.bf16.mxu0 0
        %1763 = vmatpush1.bf16.xpose.msra.mxu0 0
        %1764 = vmatprep.subr.bf16.mxu0 0
        %1765 = vmatpush1.bf16.xpose.msra.mxu0 0
        %1766 = vmatprep.subr.bf16.mxu0 0
        %1767 = vmatpush1.bf16.xpose.msra.mxu0 0
        %1768 = vmatprep.subr.bf16.mxu0 0
        %1769 = vmatpush1.bf16.xpose.msra.mxu0 0
        %1770 = vmatprep.mubr.bf16.mxu0 0
        %1771 = vmatmul.mubr.bf16.gmra.mrb[0].mxu0 %v1733
        %v1772 = vpop.f32.mrb[0].mxu0
        %v1773 = vadd.f32 0.0, %v1772
        %v1774 = vpop.f32.mrb[0].mxu0
        %v1775 = vpop.f32.mrb[0].mxu0
        %v1776 = vpop.f32.mrb[0].mxu0
        %1777 = vdwg.mxu0
        %v1778 = vsel %vm447, -inf, %v1623
        %v1779 = vsel %vm447, -inf, %v1673
        %v1780 = vsel %vm447, -inf, %v1723
        %v1781 = vsel %vm447, -inf, %v1773
        %v1782 = vsel %vm452, %v1778, -inf
        %1783 = vmax.xlane.f32.xlu0 %v1782
        %v1784 = vpop.xlane.xlu0 %1783
        %v1785 = vsel %vm452, %v1779, -inf
        %1786 = vmax.xlane.f32.xlu0 %v1785
        %v1787 = vpop.xlane.xlu0 %1786
        %v1788 = vsel %vm452, %v1780, -inf
        %1789 = vmax.xlane.f32.xlu0 %v1788
        %v1790 = vpop.xlane.xlu0 %1789
        %v1791 = vsel %vm452, %v1781, -inf
        %1792 = vmax.xlane.f32.xlu0 %v1791
        %v1793 = vpop.xlane.xlu0 %1792
        %v1794 = vsub.f32 %v1778, %v1784
        %v1795 = vsub.f32 %v1779, %v1787
        %v1796 = vsub.f32 %v1780, %v1790
        %v1797 = vsub.f32 %v1781, %v1793
        %v1798 = vmul.f32 %v1794, 1.442695
        %v1799 = vpow.pop %v1798
        %v1800 = vmul.f32 %v1795, 1.442695
        %v1801 = vpow.pop %v1800
        %v1802 = vmul.f32 %v1796, 1.442695
        %v1803 = vpow.pop %v1802
        %v1804 = vmul.f32 %v1797, 1.442695
        %v1805 = vpow.pop %v1804
        %v1806 = vsel %vm452, %v1799, 0.0
        %1807 = vadd.xlane.f32.xlu0 %v1806
        %v1808 = vpop.xlane.xlu0 %1807
        %v1809 = vsel %vm452, %v1801, 0.0
        %1810 = vadd.xlane.f32.xlu0 %v1809
        %v1811 = vpop.xlane.xlu0 %1810
        %v1812 = vsel %vm452, %v1803, 0.0
        %1813 = vadd.xlane.f32.xlu0 %v1812
        %v1814 = vpop.xlane.xlu0 %1813
        %v1815 = vsel %vm452, %v1805, 0.0
        %1816 = vadd.xlane.f32.xlu0 %v1815
        %v1817 = vpop.xlane.xlu0 %1816
        %v1818 = vpack.c.bf16 %v1799, %v1799
        %v1819 = vpack.c.bf16 %v1801, %v1801
        %v1820 = vpack.c.bf16 %v1803, %v1803
        %v1821 = vpack.c.bf16 %v1805, %v1805
        %1822 = vrot.lane.b32.xlu0 %v245, 80
        %v1823 = vpop.permute.xlu0 %1822
        %v1825 = vsel %vm452, %v1818, 0
        %v1828 = vsel %vm496, %v1823, 0
        %1830 = vmatprep.subr.bf16.mxu0 0
        %1831 = vmatpush1.bf16.msra.mxu0 %v1828
        %1832 = vmatprep.subr.bf16.mxu0 0
        %1833 = vmatpush1.bf16.msra.mxu0 0
        %1834 = vmatprep.subr.bf16.mxu0 0
        %1835 = vmatpush1.bf16.msra.mxu0 0
        %1836 = vmatprep.subr.bf16.mxu0 0
        %1837 = vmatpush1.bf16.msra.mxu0 0
        %1838 = vmatprep.subr.bf16.mxu0 0
        %1839 = vmatpush1.bf16.msra.mxu0 0
        %1840 = vmatprep.subr.bf16.mxu0 0
        %1841 = vmatpush1.bf16.msra.mxu0 0
        %1842 = vmatprep.subr.bf16.mxu0 0
        %1843 = vmatpush1.bf16.msra.mxu0 0
        %1844 = vmatprep.subr.bf16.mxu0 0
        %1845 = vmatpush1.bf16.msra.mxu0 0
        %1846 = vmatprep.subr.bf16.mxu0 0
        %1847 = vmatpush1.bf16.msra.mxu0 0
        %1848 = vmatprep.subr.bf16.mxu0 0
        %1849 = vmatpush1.bf16.msra.mxu0 0
        %1850 = vmatprep.subr.bf16.mxu0 0
        %1851 = vmatpush1.bf16.msra.mxu0 0
        %1852 = vmatprep.subr.bf16.mxu0 0
        %1853 = vmatpush1.bf16.msra.mxu0 0
        %1854 = vmatprep.subr.bf16.mxu0 0
        %1855 = vmatpush1.bf16.msra.mxu0 0
        %1856 = vmatprep.subr.bf16.mxu0 0
        %1857 = vmatpush1.bf16.msra.mxu0 0
        %1858 = vmatprep.subr.bf16.mxu0 0
        %1859 = vmatpush1.bf16.msra.mxu0 0
        %1860 = vmatprep.subr.bf16.mxu0 0
        %1861 = vmatpush1.bf16.msra.mxu0 0
        %1862 = vmatprep.mubr.bf16.mxu0 0
        %1863 = vmatmul.mubr.bf16.gmra.mrb[0].mxu0 %v1825
        %v1864 = vpop.f32.mrb[0].mxu0
        %v1865 = vadd.f32 0.0, %v1864
        %v1866 = vpop.f32.mrb[0].mxu0
        %v1867 = vpop.f32.mrb[0].mxu0
        %v1868 = vpop.f32.mrb[0].mxu0
        %1869 = vdwg.mxu0
        %1870 = vrot.lane.b32.xlu0 %v246, 80
        %v1871 = vpop.permute.xlu0 %1870
        %v1873 = vsel %vm452, %v1819, 0
        %v1876 = vsel %vm496, %v1871, 0
        %1878 = vmatprep.subr.bf16.mxu0 0
        %1879 = vmatpush1.bf16.msra.mxu0 %v1876
        %1880 = vmatprep.subr.bf16.mxu0 0
        %1881 = vmatpush1.bf16.msra.mxu0 0
        %1882 = vmatprep.subr.bf16.mxu0 0
        %1883 = vmatpush1.bf16.msra.mxu0 0
        %1884 = vmatprep.subr.bf16.mxu0 0
        %1885 = vmatpush1.bf16.msra.mxu0 0
        %1886 = vmatprep.subr.bf16.mxu0 0
        %1887 = vmatpush1.bf16.msra.mxu0 0
        %1888 = vmatprep.subr.bf16.mxu0 0
        %1889 = vmatpush1.bf16.msra.mxu0 0
        %1890 = vmatprep.subr.bf16.mxu0 0
        %1891 = vmatpush1.bf16.msra.mxu0 0
        %1892 = vmatprep.subr.bf16.mxu0 0
        %1893 = vmatpush1.bf16.msra.mxu0 0
        %1894 = vmatprep.subr.bf16.mxu0 0
        %1895 = vmatpush1.bf16.msra.mxu0 0
        %1896 = vmatprep.subr.bf16.mxu0 0
        %1897 = vmatpush1.bf16.msra.mxu0 0
        %1898 = vmatprep.subr.bf16.mxu0 0
        %1899 = vmatpush1.bf16.msra.mxu0 0
        %1900 = vmatprep.subr.bf16.mxu0 0
        %1901 = vmatpush1.bf16.msra.mxu0 0
        %1902 = vmatprep.subr.bf16.mxu0 0
        %1903 = vmatpush1.bf16.msra.mxu0 0
        %1904 = vmatprep.subr.bf16.mxu0 0
        %1905 = vmatpush1.bf16.msra.mxu0 0
        %1906 = vmatprep.subr.bf16.mxu0 0
        %1907 = vmatpush1.bf16.msra.mxu0 0
        %1908 = vmatprep.subr.bf16.mxu0 0
        %1909 = vmatpush1.bf16.msra.mxu0 0
        %1910 = vmatprep.mubr.bf16.mxu0 0
        %1911 = vmatmul.mubr.bf16.gmra.mrb[0].mxu0 %v1873
        %v1912 = vpop.f32.mrb[0].mxu0
        %v1913 = vadd.f32 0.0, %v1912
        %v1914 = vpop.f32.mrb[0].mxu0
        %v1915 = vpop.f32.mrb[0].mxu0
        %v1916 = vpop.f32.mrb[0].mxu0
        %1917 = vdwg.mxu0
        %1918 = vrot.lane.b32.xlu0 %v247, 80
        %v1919 = vpop.permute.xlu0 %1918
        %v1921 = vsel %vm452, %v1820, 0
        %v1924 = vsel %vm496, %v1919, 0
        %1926 = vmatprep.subr.bf16.mxu0 0
        %1927 = vmatpush1.bf16.msra.mxu0 %v1924
        %1928 = vmatprep.subr.bf16.mxu0 0
        %1929 = vmatpush1.bf16.msra.mxu0 0
        %1930 = vmatprep.subr.bf16.mxu0 0
        %1931 = vmatpush1.bf16.msra.mxu0 0
        %1932 = vmatprep.subr.bf16.mxu0 0
        %1933 = vmatpush1.bf16.msra.mxu0 0
        %1934 = vmatprep.subr.bf16.mxu0 0
        %1935 = vmatpush1.bf16.msra.mxu0 0
        %1936 = vmatprep.subr.bf16.mxu0 0
        %1937 = vmatpush1.bf16.msra.mxu0 0
        %1938 = vmatprep.subr.bf16.mxu0 0
        %1939 = vmatpush1.bf16.msra.mxu0 0
        %1940 = vmatprep.subr.bf16.mxu0 0
        %1941 = vmatpush1.bf16.msra.mxu0 0
        %1942 = vmatprep.subr.bf16.mxu0 0
        %1943 = vmatpush1.bf16.msra.mxu0 0
        %1944 = vmatprep.subr.bf16.mxu0 0
        %1945 = vmatpush1.bf16.msra.mxu0 0
        %1946 = vmatprep.subr.bf16.mxu0 0
        %1947 = vmatpush1.bf16.msra.mxu0 0
        %1948 = vmatprep.subr.bf16.mxu0 0
        %1949 = vmatpush1.bf16.msra.mxu0 0
        %1950 = vmatprep.subr.bf16.mxu0 0
        %1951 = vmatpush1.bf16.msra.mxu0 0
        %1952 = vmatprep.subr.bf16.mxu0 0
        %1953 = vmatpush1.bf16.msra.mxu0 0
        %1954 = vmatprep.subr.bf16.mxu0 0
        %1955 = vmatpush1.bf16.msra.mxu0 0
        %1956 = vmatprep.subr.bf16.mxu0 0
        %1957 = vmatpush1.bf16.msra.mxu0 0
        %1958 = vmatprep.mubr.bf16.mxu0 0
        %1959 = vmatmul.mubr.bf16.gmra.mrb[0].mxu0 %v1921
        %v1960 = vpop.f32.mrb[0].mxu0
        %v1961 = vadd.f32 0.0, %v1960
        %v1962 = vpop.f32.mrb[0].mxu0
        %v1963 = vpop.f32.mrb[0].mxu0
        %v1964 = vpop.f32.mrb[0].mxu0
        %1965 = vdwg.mxu0
        %1966 = vrot.lane.b32.xlu0 %v248, 80
        %v1967 = vpop.permute.xlu0 %1966
        %v1969 = vsel %vm452, %v1821, 0
        %v1972 = vsel %vm496, %v1967, 0
        %1974 = vmatprep.subr.bf16.mxu0 0
        %1975 = vmatpush1.bf16.msra.mxu0 %v1972
        %1976 = vmatprep.subr.bf16.mxu0 0
        %1977 = vmatpush1.bf16.msra.mxu0 0
        %1978 = vmatprep.subr.bf16.mxu0 0
        %1979 = vmatpush1.bf16.msra.mxu0 0
        %1980 = vmatprep.subr.bf16.mxu0 0
        %1981 = vmatpush1.bf16.msra.mxu0 0
        %1982 = vmatprep.subr.bf16.mxu0 0
        %1983 = vmatpush1.bf16.msra.mxu0 0
        %1984 = vmatprep.subr.bf16.mxu0 0
        %1985 = vmatpush1.bf16.msra.mxu0 0
        %1986 = vmatprep.subr.bf16.mxu0 0
        %1987 = vmatpush1.bf16.msra.mxu0 0
        %1988 = vmatprep.subr.bf16.mxu0 0
        %1989 = vmatpush1.bf16.msra.mxu0 0
        %1990 = vmatprep.subr.bf16.mxu0 0
        %1991 = vmatpush1.bf16.msra.mxu0 0
        %1992 = vmatprep.subr.bf16.mxu0 0
        %1993 = vmatpush1.bf16.msra.mxu0 0
        %1994 = vmatprep.subr.bf16.mxu0 0
        %1995 = vmatpush1.bf16.msra.mxu0 0
        %1996 = vmatprep.subr.bf16.mxu0 0
        %1997 = vmatpush1.bf16.msra.mxu0 0
        %1998 = vmatprep.subr.bf16.mxu0 0
        %1999 = vmatpush1.bf16.msra.mxu0 0
        %2000 = vmatprep.subr.bf16.mxu0 0
        %2001 = vmatpush1.bf16.msra.mxu0 0
        %2002 = vmatprep.subr.bf16.mxu0 0
        %2003 = vmatpush1.bf16.msra.mxu0 0
        %2004 = vmatprep.subr.bf16.mxu0 0
        %2005 = vmatpush1.bf16.msra.mxu0 0
        %2006 = vmatprep.mubr.bf16.mxu0 0
        %2007 = vmatmul.mubr.bf16.gmra.mrb[0].mxu0 %v1969
        %v2008 = vpop.f32.mrb[0].mxu0
        %v2009 = vadd.f32 0.0, %v2008
        %v2010 = vpop.f32.mrb[0].mxu0
        %v2011 = vpop.f32.mrb[0].mxu0
        %v2012 = vpop.f32.mrb[0].mxu0
        %2013 = vdwg.mxu0
        %v2014 = vrcp.pop %v1808
        %v2015 = vrcp.pop %v1811
        %v2016 = vrcp.pop %v1814
        %v2017 = vrcp.pop %v1817
        %v2018 = vmul.f32 %v1865, %v2014
        %v2019 = vmul.f32 %v1913, %v2015
        %v2020 = vmul.f32 %v1961, %v2016
        %v2021 = vmul.f32 %v2009, %v2017
        %2026 = vrot.lane.b32.xlu0 %v1130, 16
        %v2027 = vpop.permute.xlu0 %2026
        %2028 = vrot.lane.b32.xlu0 %v1131, 16
        %v2029 = vpop.permute.xlu0 %2028
        %2030 = vrot.lane.b32.xlu0 %v1132, 16
        %v2031 = vpop.permute.xlu0 %2030
        %2032 = vrot.lane.b32.xlu0 %v1133, 16
        %v2033 = vpop.permute.xlu0 %2032
        %2042 = vrot.lane.b32.xlu0 %v1574, 32
        %v2043 = vpop.permute.xlu0 %2042
        %2044 = vrot.lane.b32.xlu0 %v1575, 32
        %v2045 = vpop.permute.xlu0 %2044
        %2046 = vrot.lane.b32.xlu0 %v1576, 32
        %v2047 = vpop.permute.xlu0 %2046
        %2048 = vrot.lane.b32.xlu0 %v1577, 32
        %v2049 = vpop.permute.xlu0 %2048
        %2058 = vrot.lane.b32.xlu0 %v2018, 48
        %v2059 = vpop.permute.xlu0 %2058
        %2060 = vrot.lane.b32.xlu0 %v2019, 48
        %v2061 = vpop.permute.xlu0 %2060
        %2062 = vrot.lane.b32.xlu0 %v2020, 48
        %v2063 = vpop.permute.xlu0 %2062
        %2064 = vrot.lane.b32.xlu0 %v2021, 48
        %v2065 = vpop.permute.xlu0 %2064
        %v2070 = vsel %vm252, %v682, %v2027
        %v2071 = vsel %vm252, %v683, %v2029
        %v2072 = vsel %vm252, %v684, %v2031
        %v2073 = vsel %vm252, %v685, %v2033
        %v2074 = vsel %vm176, %v2070, %v2043
        %v2075 = vsel %vm176, %v2071, %v2045
        %v2076 = vsel %vm176, %v2072, %v2047
        %v2077 = vsel %vm176, %v2073, %v2049
        %vm2078 = vcmask 392192
        %v2079 = vsel %vm2078, %v2074, %v2059
        %v2080 = vsel %vm2078, %v2075, %v2061
        %v2081 = vsel %vm2078, %v2076, %v2063
        %v2082 = vsel %vm2078, %v2077, %v2065
        %vm2083 = vcmask 523264
        %2084 = vst.msk [vmem:[%s137] sm:$0xff] %vm2083, %v2079
        %2085 = vst.msk [vmem:[%s137 + $0x8] sm:$0xff] %vm2083, %v2080
        %2086 = vst.msk [vmem:[%s137 + $0x10] sm:$0xff] %vm2083, %v2081
        %2087 = vst.msk [vmem:[%s137 + $0x18] sm:$0xff] %vm2083, %v2082
        %s2088 = sand.u32 %s71, 1
        %s2089 = scalar_lea.sflag [#allocation3], %s2088
        %s2090 = sand.u32 %s71, 1
        %s2091 = smul.addr %s2090, 32
        %s2092 = scalar_lea.vmem [#allocation2], %s2091
        // Predicated region
        $region29: #{tpu_custom_call.1} parent=27 // pred_check
          %p2093 = pneg %p81
        $region30: #{tpu_custom_call.1} parent=27 // pred_check_branch
          %2095 = sbr.rel (%p2093) target = $region32
        $region31: #{tpu_custom_call.1} parent=27 // pred_region
          %s2096 = smul.u32 4, %s16
          %s2098 = ssub.s32 512, 512
          %2099 = vsyncadd %s2089, %s2098
          %s2100 = smul.addr %s2096, 128
          %s2101 = scalar_lea.hbm %s2, %s2100
          %s2102 = sshll.u32 %s2092, 4
          %s2103 = int_to_ptr.vmem [resolvable:$true] %s2102
          %2108 = dma.vmem_to_hbm [thread:$0]  %s2103, 512, %s2101, %s2089, 128, 128, 8
        $region32: #{tpu_custom_call.1} parent=27 // pred_fallthru
          _
      $region28: #{tpu_custom_call.1} parent=5 // pred_fallthru
        _
      %p2109 = scmp.le.s32.totalorder 2, %s11
      // Predicated region
      $region33: #{tpu_custom_call.1} parent=5 // pred_check
        %p2110 = pneg %p2109
      $region34: #{tpu_custom_call.1} parent=5 // pred_check_branch
        %2112 = sbr.rel (%p2110) target = $region36
      $region35: #{tpu_custom_call.1} parent=5 // pred_region
        %s2113 = ssub.s32 %s11, 2
        // Predicated region
        $region37: #{tpu_custom_call.1} parent=35 // pred_check
          %p2114 = pneg %p87
        $region38: #{tpu_custom_call.1} parent=35 // pred_check_branch
          %2116 = sbr.rel (%p2114) target = $region40
        $region39: #{tpu_custom_call.1} parent=35 // pred_region
          %s2117 = sand.u32 %s72, 1
          %s2118 = scalar_lea.sflag [#allocation3], %s2117
          %s2119 = sand.u32 %s72, 1
          %s2120 = smul.addr %s2119, 32
          %s2121 = scalar_lea.vmem [#allocation2], %s2120
          %2122 = dma.done %s2118, 512
        $region40: #{tpu_custom_call.1} parent=35 // pred_fallthru
          _
      $region36: #{tpu_custom_call.1} parent=5 // pred_fallthru
        _
    $region6: #{tpu_custom_call.1} parent=1 // loop_footer
      %s15 = sadd.s32 1, %s11
    $region7: #{tpu_custom_call.1} parent=1 // loop_footer_branch
      %10 = sbr.rel target = $region3
    $region8: #{tpu_custom_call.1} parent=1 // loop_exit
      _
    %2123 = vsyncpa [#allocation3], 1
    %s2124 = scalar_lea.sflag [#allocation3], 1
    %2125 = vsyncpa %s2124, 1

</llo_original>
